<compile_context>
chip_gen: v7x
topology: tpu7x:2x2x1
jax: 0.10.0
libtpu: 0.0.40
codegen_flags: <defaults>
</compile_context>

<pallas_src>
import functools

import jax
import jax.numpy as jnp
from jax.experimental import pallas as pl
from jax.experimental.pallas import tpu as pltpu


def _pick_block_rows(bsz):
    """Anchor-row tile size: largest multiple of 8 dividing bsz, capped so the
    handful of live (TM, bsz) f32 score/exp temporaries (both halves) stay well
    under per-generation scoped-VMEM limits (v7x has only 64 MiB physical)."""
    if bsz % 8 != 0 or bsz <= 256:
        return bsz                      # small batch: single full-dim block
    budget = 24 * 1024 * 1024           # bytes for ~12 live (TM, bsz) f32 temps
    cap = max(8, budget // (12 * bsz * 4))
    tm = max(8, min(512, (cap // 8) * 8, bsz))
    while bsz % tm:
        tm -= 8
    return tm


def _supcon_kernel(xi_a_ref, xt_a_ref, xi_ref, xt_ref, out_ref, acc_ref, *,
                   temperature, base_temperature, batch_size, block_rows):
    rb = pl.program_id(0)

    @pl.when(rb == 0)
    def _init():
        acc_ref[...] = jnp.zeros_like(acc_ref)

    inv_t = 1.0 / temperature
    tm = block_rows

    # Anchor tiles for this row block; fold 1/T into the MXU LHS operand
    # (kept in the storage dtype so bf16 inputs still hit the bf16 MXU rate).
    xi_a = xi_a_ref[...]
    xt_a = xt_a_ref[...]
    scale = jnp.asarray(inv_t, dtype=xi_a.dtype)
    lhs_i = xi_a * scale                                   # (TM, D) Xi anchors / T
    lhs_t = xt_a * scale                                   # (TM, D) Xt anchors / T

    # Contrast features stay resident in VMEM in their storage dtype.
    xi_c = xi_ref[...]
    xt_c = xt_ref[...]
    dn = (((1,), (1,)), ((), ()))                          # contract feature dim; no transpose
    hp = jax.lax.Precision.HIGHEST
    s_ii = jax.lax.dot_general(lhs_i, xi_c, dn, precision=hp,
                               preferred_element_type=jnp.float32)   # (TM, bsz)
    s_it = jax.lax.dot_general(lhs_i, xt_c, dn, precision=hp,
                               preferred_element_type=jnp.float32)
    s_ti = jax.lax.dot_general(lhs_t, xi_c, dn, precision=hp,
                               preferred_element_type=jnp.float32)
    s_tt = jax.lax.dot_general(lhs_t, xt_c, dn, precision=hp,
                               preferred_element_type=jnp.float32)

    # Self-contrast entries of this row block sit at column (r0 + i) of the
    # same-half score tile: build only a (TM, bsz) mask, not NxN.
    r0 = rb * tm
    row = jax.lax.broadcasted_iota(jnp.int32, (tm, batch_size), 0)
    col = jax.lax.broadcasted_iota(jnp.int32, (tm, batch_size), 1)
    self_mask = col == (row + r0)
    neg_big = jnp.float32(-1e30)
    s_ii_ns = jnp.where(self_mask, neg_big, s_ii)          # non-self same-half scores
    s_tt_ns = jnp.where(self_mask, neg_big, s_tt)

    # Single positive per anchor (its partner view): rowwise Xi·Xt / T.
    pos = jnp.sum(xi_a.astype(jnp.float32) * xt_a.astype(jnp.float32),
                  axis=1, keepdims=True) * inv_t           # (TM, 1)

    # Row max over non-self contrasts (stabiliser choice cancels analytically).
    m_i = jnp.maximum(jnp.max(s_ii_ns, axis=1, keepdims=True),
                      jnp.max(s_it, axis=1, keepdims=True))
    m_t = jnp.maximum(jnp.max(s_ti, axis=1, keepdims=True),
                      jnp.max(s_tt_ns, axis=1, keepdims=True))

    den_i = (jnp.sum(jnp.exp(s_ii_ns - m_i), axis=1, keepdims=True)
             + jnp.sum(jnp.exp(s_it - m_i), axis=1, keepdims=True))
    den_t = (jnp.sum(jnp.exp(s_ti - m_t), axis=1, keepdims=True)
             + jnp.sum(jnp.exp(s_tt_ns - m_t), axis=1, keepdims=True))

    # mask.sum(1) == 1 in the SimCLR case => mean_log_prob_pos == log_prob[partner].
    neg_ratio = -(temperature / base_temperature)
    loss_i = neg_ratio * (pos - m_i - jnp.log(den_i))      # (TM, 1) Xi-half anchors
    loss_t = neg_ratio * (pos - m_t - jnp.log(den_t))      # (TM, 1) Xt-half anchors

    acc_ref[...] += jnp.sum(loss_i + loss_t, keepdims=True)

    @pl.when(rb == pl.num_programs(0) - 1)
    def _finalize():
        out_ref[...] = acc_ref[...] * (1.0 / (2.0 * batch_size))


def supcon_loss(Xi, Xt, temperature=0.07, base_temperature=0.07):
    """SupConLoss.forward(Xi, Xt) with labels=None, mask=None, contrast_mode='all'.
    Xi, Xt: [bsz, feat_dim] (typically L2-normalised embeddings)."""
    assert Xi.shape == Xt.shape and Xi.ndim == 2
    bsz, feat_dim = Xi.shape
    tm = _pick_block_rows(bsz)
    grid = (bsz // tm,)

    kernel = functools.partial(
        _supcon_kernel,
        temperature=float(temperature),
        base_temperature=float(base_temperature),
        batch_size=bsz,
        block_rows=tm,
    )
    out = pl.pallas_call(
        kernel,
        out_shape=jax.ShapeDtypeStruct((1, 1), jnp.float32),
        grid_spec=pltpu.PrefetchScalarGridSpec(
            num_scalar_prefetch=0,
            grid=grid,
            in_specs=[
                pl.BlockSpec((tm, feat_dim), lambda rb: (rb, 0)),    # Xi anchor row tile
                pl.BlockSpec((tm, feat_dim), lambda rb: (rb, 0)),    # Xt anchor row tile
                pl.BlockSpec((bsz, feat_dim), lambda rb: (0, 0)),    # Xi contrast (resident)
                pl.BlockSpec((bsz, feat_dim), lambda rb: (0, 0)),    # Xt contrast (resident)
            ],
            out_specs=pl.BlockSpec((1, 1), lambda rb: (0, 0)),
            scratch_shapes=[pltpu.VMEM((1, 1), jnp.float32)],
        ),
        compiler_params=pltpu.CompilerParams(
            # Scalar loss accumulator is carried across row blocks -> "arbitrary".
            dimension_semantics=("arbitrary",),
        ),
    )(Xi, Xt, Xi, Xt)
    return out[0, 0]


def _supcon_loss_ref(Xi, Xt, temperature=0.07, base_temperature=0.07):
    """Pure-JAX reference mirroring the PyTorch forward (SimCLR case)."""
    bsz = Xi.shape[0]
    f = jnp.concatenate([Xi, Xt], axis=0).astype(jnp.float32)        # [2B, D]
    n = 2 * bsz
    adc = jax.lax.dot_general(f, f, (((1,), (1,)), ((), ())),
                              precision=jax.lax.Precision.HIGHEST) / temperature
    logits = adc - jnp.max(adc, axis=1, keepdims=True)
    logits_mask = 1.0 - jnp.eye(n, dtype=jnp.float32)
    mask = jnp.tile(jnp.eye(bsz, dtype=jnp.float32), (2, 2)) * logits_mask
    exp_logits = jnp.exp(logits) * logits_mask
    log_prob = logits - jnp.log(exp_logits.sum(1, keepdims=True))
    mean_log_prob_pos = (mask * log_prob).sum(1) / mask.sum(1)
    loss = -(temperature / base_temperature) * mean_log_prob_pos
    return loss.reshape(2, bsz).mean()


if __name__ == "__main__":
    key = jax.random.PRNGKey(0)
    k1, k2 = jax.random.split(key)
    bsz, feat_dim = 8, 32
    Xi = jax.random.normal(k1, (bsz, feat_dim), dtype=jnp.float32)
    Xt = jax.random.normal(k2, (bsz, feat_dim), dtype=jnp.float32)
    # SupCon consumes L2-normalised projection-head embeddings. With raw
    # unnormalised features and T=0.07 the torch-faithful math over/underflows
    # (exp of ~-400 logits) and both kernel and reference went NaN in the
    # previous run — so normalise the example inputs, as in real usage.
    Xi = Xi / jnp.linalg.norm(Xi, axis=1, keepdims=True)
    Xt = Xt / jnp.linalg.norm(Xt, axis=1, keepdims=True)

    loss = supcon_loss(Xi, Xt)
    loss = jax.block_until_ready(loss)

    ref = _supcon_loss_ref(Xi, Xt)
    assert jnp.isfinite(loss), loss
    assert jnp.allclose(loss, ref, rtol=5e-4, atol=5e-4), (loss, ref)

    print("KERNEL_OK")
</pallas_src>

<mosaic_0001>
module attributes {stable_mosaic.version = 11 : i64} {
  func.func @_supcon_kernel(%arg0: i32, %arg1: memref<8x32xf32, #tpu.memory_space<vmem>>, %arg2: memref<8x32xf32, #tpu.memory_space<vmem>>, %arg3: memref<8x32xf32, #tpu.memory_space<vmem>>, %arg4: memref<8x32xf32, #tpu.memory_space<vmem>>, %arg5: memref<1x1xf32, #tpu.memory_space<vmem>>, %arg6: memref<1x1xf32, #tpu.memory_space<vmem>>) attributes {dimension_semantics = [#tpu.dimension_semantics<arbitrary>], iteration_bounds = array<i64: 1>, scalar_prefetch = 0 : i64, scratch_operands = 1 : i64, tpu.core_type = #tpu.core_type<tc>, window_params = [{transform_indices = @transform_0, window_bounds = array<i64: 8, 32>}, {transform_indices = @transform_1, window_bounds = array<i64: 8, 32>}, {pipeline_mode = #tpu.pipeline_mode<synchronous>, transform_indices = @transform_2, window_bounds = array<i64: 8, 32>}, {pipeline_mode = #tpu.pipeline_mode<synchronous>, transform_indices = @transform_3, window_bounds = array<i64: 8, 32>}, {pipeline_mode = #tpu.pipeline_mode<synchronous>, transform_indices = @transform_4, window_bounds = array<i64: 1, 1>}]} {
    %c0_i32 = arith.constant 0 : i32
    %0 = arith.cmpi eq, %arg0, %c0_i32 : i32
    %1 = arith.extui %0 : i1 to i32
    %c0_i32_0 = arith.constant 0 : i32
    %2 = arith.cmpi ne, %1, %c0_i32_0 : i32
    scf.if %2 {
      %cst_34 = arith.constant 0.000000e+00 : f32
      %84 = vector.broadcast %cst_34 : f32 to vector<1x1xf32>
      %c0_35 = arith.constant 0 : index
      %c0_36 = arith.constant 0 : index
      %85 = vector.load %arg6[%c0_35, %c0_36] : memref<1x1xf32, #tpu.memory_space<vmem>>, vector<1x1xf32>
      tpu.vector_store %arg6[%c0_35, %c0_36], %84 {strides = array<i32>} : memref<1x1xf32, #tpu.memory_space<vmem>>, vector<1x1xf32>,
    } else {
    }
    %c0 = arith.constant 0 : index
    %c0_1 = arith.constant 0 : index
    %3 = vector.load %arg1[%c0, %c0_1] : memref<8x32xf32, #tpu.memory_space<vmem>>, vector<8x32xf32>
    %c0_2 = arith.constant 0 : index
    %c0_3 = arith.constant 0 : index
    %4 = vector.load %arg2[%c0_2, %c0_3] : memref<8x32xf32, #tpu.memory_space<vmem>>, vector<8x32xf32>
    %cst = arith.constant 14.2857141 : f32
    %5 = vector.broadcast %cst : f32 to vector<8x32xf32>
    %6 = arith.mulf %3, %5 : vector<8x32xf32>
    %cst_4 = arith.constant 14.2857141 : f32
    %7 = vector.broadcast %cst_4 : f32 to vector<8x32xf32>
    %8 = arith.mulf %4, %7 : vector<8x32xf32>
    %c0_5 = arith.constant 0 : index
    %c0_6 = arith.constant 0 : index
    %9 = vector.load %arg3[%c0_5, %c0_6] : memref<8x32xf32, #tpu.memory_space<vmem>>, vector<8x32xf32>
    %c0_7 = arith.constant 0 : index
    %c0_8 = arith.constant 0 : index
    %10 = vector.load %arg4[%c0_7, %c0_8] : memref<8x32xf32, #tpu.memory_space<vmem>>, vector<8x32xf32>
    %cst_9 = arith.constant dense<0.000000e+00> : vector<8x8xf32>
    %11 = tpu.matmul %6, %9, %cst_9 {dimension_numbers = #tpu.dot_dimension_numbers<[1], [1], [0], [0], [0, 0, 1, 0], [], []>, precision = #tpu.contract_precision<fp32>} : vector<8x32xf32>, vector<8x32xf32>, vector<8x8xf32> -> vector<8x8xf32>
    %cst_10 = arith.constant dense<0.000000e+00> : vector<8x8xf32>
    %12 = tpu.matmul %6, %10, %cst_10 {dimension_numbers = #tpu.dot_dimension_numbers<[1], [1], [0], [0], [0, 0, 1, 0], [], []>, precision = #tpu.contract_precision<fp32>} : vector<8x32xf32>, vector<8x32xf32>, vector<8x8xf32> -> vector<8x8xf32>
    %cst_11 = arith.constant dense<0.000000e+00> : vector<8x8xf32>
    %13 = tpu.matmul %8, %9, %cst_11 {dimension_numbers = #tpu.dot_dimension_numbers<[1], [1], [0], [0], [0, 0, 1, 0], [], []>, precision = #tpu.contract_precision<fp32>} : vector<8x32xf32>, vector<8x32xf32>, vector<8x8xf32> -> vector<8x8xf32>
    %cst_12 = arith.constant dense<0.000000e+00> : vector<8x8xf32>
    %14 = tpu.matmul %8, %10, %cst_12 {dimension_numbers = #tpu.dot_dimension_numbers<[1], [1], [0], [0], [0, 0, 1, 0], [], []>, precision = #tpu.contract_precision<fp32>} : vector<8x32xf32>, vector<8x32xf32>, vector<8x8xf32> -> vector<8x8xf32>
    %c8_i32 = arith.constant 8 : i32
    %15 = arith.muli %arg0, %c8_i32 : i32
    %16 = tpu.iota {dimensions = array<i32: 0>} : vector<8x8xi32>
    %17 = tpu.iota {dimensions = array<i32: 1>} : vector<8x8xi32>
    %18 = vector.broadcast %15 : i32 to vector<8x8xi32>
    %19 = arith.addi %16, %18 : vector<8x8xi32>
    %20 = arith.cmpi eq, %17, %19 : vector<8x8xi32>
    %cst_13 = arith.constant -1.000000e+30 : f32
    %21 = vector.broadcast %cst_13 : f32 to vector<8x8xf32>
    %22 = arith.select %20, %21, %11 : vector<8x8xi1>, vector<8x8xf32>
    %cst_14 = arith.constant -1.000000e+30 : f32
    %23 = vector.broadcast %cst_14 : f32 to vector<8x8xf32>
    %24 = arith.select %20, %23, %14 : vector<8x8xi1>, vector<8x8xf32>
    %25 = arith.mulf %3, %4 : vector<8x32xf32>
    %cst_15 = arith.constant dense<0.000000e+00> : vector<8xf32>
    %26 = vector.multi_reduction <add>, %25, %cst_15 [1] : vector<8x32xf32> to vector<8xf32>
    %27 = vector.shape_cast %26 : vector<8xf32> to vector<8x1xf32>
    %cst_16 = arith.constant 14.2857141 : f32
    %28 = vector.broadcast %cst_16 : f32 to vector<8x1xf32>
    %29 = arith.mulf %27, %28 : vector<8x1xf32>
    %cst_17 = arith.constant dense<0xFF800000> : vector<8xf32>
    %30 = vector.multi_reduction <maximumf>, %22, %cst_17 [1] : vector<8x8xf32> to vector<8xf32>
    %31 = vector.shape_cast %30 : vector<8xf32> to vector<8x1xf32>
    %cst_18 = arith.constant dense<0xFF800000> : vector<8xf32>
    %32 = vector.multi_reduction <maximumf>, %12, %cst_18 [1] : vector<8x8xf32> to vector<8xf32>
    %33 = vector.shape_cast %32 : vector<8xf32> to vector<8x1xf32>
    %34 = arith.maximumf %31, %33 : vector<8x1xf32>
    %cst_19 = arith.constant dense<0xFF800000> : vector<8xf32>
    %35 = vector.multi_reduction <maximumf>, %13, %cst_19 [1] : vector<8x8xf32> to vector<8xf32>
    %36 = vector.shape_cast %35 : vector<8xf32> to vector<8x1xf32>
    %cst_20 = arith.constant dense<0xFF800000> : vector<8xf32>
    %37 = vector.multi_reduction <maximumf>, %24, %cst_20 [1] : vector<8x8xf32> to vector<8xf32>
    %38 = vector.shape_cast %37 : vector<8xf32> to vector<8x1xf32>
    %39 = arith.maximumf %36, %38 : vector<8x1xf32>
    %40 = vector.broadcast %34 : vector<8x1xf32> to vector<8x8xf32>
    %41 = arith.subf %22, %40 : vector<8x8xf32>
    %42 = math.exp %41 : vector<8x8xf32>
    %cst_21 = arith.constant dense<0.000000e+00> : vector<8xf32>
    %43 = vector.multi_reduction <add>, %42, %cst_21 [1] : vector<8x8xf32> to vector<8xf32>
    %44 = vector.shape_cast %43 : vector<8xf32> to vector<8x1xf32>
    %45 = vector.broadcast %34 : vector<8x1xf32> to vector<8x8xf32>
    %46 = arith.subf %12, %45 : vector<8x8xf32>
    %47 = math.exp %46 : vector<8x8xf32>
    %cst_22 = arith.constant dense<0.000000e+00> : vector<8xf32>
    %48 = vector.multi_reduction <add>, %47, %cst_22 [1] : vector<8x8xf32> to vector<8xf32>
    %49 = vector.shape_cast %48 : vector<8xf32> to vector<8x1xf32>
    %50 = arith.addf %44, %49 : vector<8x1xf32>
    %51 = vector.broadcast %39 : vector<8x1xf32> to vector<8x8xf32>
    %52 = arith.subf %13, %51 : vector<8x8xf32>
    %53 = math.exp %52 : vector<8x8xf32>
    %cst_23 = arith.constant dense<0.000000e+00> : vector<8xf32>
    %54 = vector.multi_reduction <add>, %53, %cst_23 [1] : vector<8x8xf32> to vector<8xf32>
    %55 = vector.shape_cast %54 : vector<8xf32> to vector<8x1xf32>
    %56 = vector.broadcast %39 : vector<8x1xf32> to vector<8x8xf32>
    %57 = arith.subf %24, %56 : vector<8x8xf32>
    %58 = math.exp %57 : vector<8x8xf32>
    %cst_24 = arith.constant dense<0.000000e+00> : vector<8xf32>
    %59 = vector.multi_reduction <add>, %58, %cst_24 [1] : vector<8x8xf32> to vector<8xf32>
    %60 = vector.shape_cast %59 : vector<8xf32> to vector<8x1xf32>
    %61 = arith.addf %55, %60 : vector<8x1xf32>
    %62 = arith.subf %29, %34 : vector<8x1xf32>
    %63 = math.log %50 : vector<8x1xf32>
    %64 = arith.subf %62, %63 : vector<8x1xf32>
    %cst_25 = arith.constant -1.000000e+00 : f32
    %65 = vector.broadcast %cst_25 : f32 to vector<8x1xf32>
    %66 = arith.mulf %65, %64 : vector<8x1xf32>
    %67 = arith.subf %29, %39 : vector<8x1xf32>
    %68 = math.log %61 : vector<8x1xf32>
    %69 = arith.subf %67, %68 : vector<8x1xf32>
    %cst_26 = arith.constant -1.000000e+00 : f32
    %70 = vector.broadcast %cst_26 : f32 to vector<8x1xf32>
    %71 = arith.mulf %70, %69 : vector<8x1xf32>
    %c0_27 = arith.constant 0 : index
    %c0_28 = arith.constant 0 : index
    %72 = vector.load %arg6[%c0_27, %c0_28] : memref<1x1xf32, #tpu.memory_space<vmem>>, vector<1x1xf32>
    %73 = arith.addf %66, %71 : vector<8x1xf32>
    %74 = vector.shape_cast %73 : vector<8x1xf32> to vector<1x8x1xf32>
    %cst_29 = arith.constant dense<0.000000e+00> : vector<1xf32>
    %75 = vector.multi_reduction <add>, %74, %cst_29 [1, 2] : vector<1x8x1xf32> to vector<1xf32>
    %76 = vector.shape_cast %75 : vector<1xf32> to vector<1x1x1xf32>
    %77 = vector.extract %76[0, 0, 0] : f32 from vector<1x1x1xf32>
    %78 = vector.broadcast %77 : f32 to vector<1x1xf32>
    %79 = arith.addf %72, %78 : vector<1x1xf32>
    %c0_30 = arith.constant 0 : index
    %c0_31 = arith.constant 0 : index
    %80 = vector.load %arg6[%c0_30, %c0_31] : memref<1x1xf32, #tpu.memory_space<vmem>>, vector<1x1xf32>
    tpu.vector_store %arg6[%c0_30, %c0_31], %79 {strides = array<i32>} : memref<1x1xf32, #tpu.memory_space<vmem>>, vector<1x1xf32>,
    %c0_i32_32 = arith.constant 0 : i32
    %81 = arith.cmpi eq, %arg0, %c0_i32_32 : i32
    %82 = arith.extui %81 : i1 to i32
    %c0_i32_33 = arith.constant 0 : i32
    %83 = arith.cmpi ne, %82, %c0_i32_33 : i32
    scf.if %83 {
      %c0_34 = arith.constant 0 : index
      %c0_35 = arith.constant 0 : index
      %84 = vector.load %arg6[%c0_34, %c0_35] : memref<1x1xf32, #tpu.memory_space<vmem>>, vector<1x1xf32>
      %cst_36 = arith.constant 6.250000e-02 : f32
      %85 = vector.broadcast %cst_36 : f32 to vector<1x1xf32>
      %86 = arith.mulf %84, %85 : vector<1x1xf32>
      %c0_37 = arith.constant 0 : index
      %c0_38 = arith.constant 0 : index
      %87 = vector.load %arg5[%c0_37, %c0_38] : memref<1x1xf32, #tpu.memory_space<vmem>>, vector<1x1xf32>
      tpu.vector_store %arg5[%c0_37, %c0_38], %86 {strides = array<i32>} : memref<1x1xf32, #tpu.memory_space<vmem>>, vector<1x1xf32>,
    } else {
    }
    return
  }
  func.func @transform_0(%arg0: i32) -> (i32, i32) {
    %c0_i32 = arith.constant 0 : i32
    %c0_i32_0 = arith.constant 0 : i32
    return %arg0, %c0_i32 : i32, i32
  }
  func.func @transform_1(%arg0: i32) -> (i32, i32) {
    %c0_i32 = arith.constant 0 : i32
    %c0_i32_0 = arith.constant 0 : i32
    return %arg0, %c0_i32 : i32, i32
  }
  func.func @transform_2(%arg0: i32) -> (i32, i32) {
    %c0_i32 = arith.constant 0 : i32
    %c0_i32_0 = arith.constant 0 : i32
    %c0_i32_1 = arith.constant 0 : i32
    return %c0_i32, %c0_i32_0 : i32, i32
  }
  func.func @transform_3(%arg0: i32) -> (i32, i32) {
    %c0_i32 = arith.constant 0 : i32
    %c0_i32_0 = arith.constant 0 : i32
    %c0_i32_1 = arith.constant 0 : i32
    return %c0_i32, %c0_i32_0 : i32, i32
  }
  func.func @transform_4(%arg0: i32) -> (i32, i32) {
    %c0_i32 = arith.constant 0 : i32
    %c0_i32_0 = arith.constant 0 : i32
    %c0_i32_1 = arith.constant 0 : i32
    return %c0_i32, %c0_i32_0 : i32, i32
  }
}

</mosaic_0001>

<llo_original>
// kernel: tpu_custom_call.1
$region0: #{tpu_custom_call.1}
  #allocation0 [shape = 'u32[]', space=smem, size = 0x4, offset = 0x4, fixed_abs, tag = 'smem constant byte address 0x4 - core index']
  #allocation1 [shape = 'u32[144,128]{1,0:T(1,128)}', space=vmem, size = 0x12000, scoped, tag = 'internal scratch']
  #allocation2 [shape = 'f32[1,1]{1,0:T(1,128)}', space=vmem, size = 0x200, scoped, tag = 'scratch operand']
  %s0 = inlined_call_operand.hbm [shape: f32[8,32], index: 0, kind: input, shape index: {}]
  %s1 = inlined_call_operand.hbm [shape: f32[8,32], index: 1, kind: input, shape index: {}]
  %s2 = inlined_call_operand.hbm [shape: f32[8,32], index: 2, kind: input, shape index: {}]
  %s3 = inlined_call_operand.vmem [shape: f32[8,32], index: 3, kind: input, shape index: {}]
  %s4 = inlined_call_operand.hbm [shape: f32[1,1], index: 4, kind: output, shape index: {}]
  %s5 = sld [smem:[#allocation0]]
  $region46: #{tpu_custom_call.1} parent=0
    _
  %s7 = ssub.s32 1, %s5
  %s8 = scalar_select 0, %s7, %s5
  $region1: #{tpu_custom_call.1} parent=0
    #allocation3 [shape = 'u8[4096]{0}', space=vmem, size = 0x1000, scoped, tag = 'input window, operand 0, single buffered']
    #allocation4 [shape = 's32[1]{0}', space=sflag, size = 0x4, scoped, tag = 'scoped memory for tpu_custom_call.1']
    #allocation5 [shape = 's32[1]{0}', space=sflag, size = 0x4, scoped, tag = 'scoped memory for tpu_custom_call.1']
    #allocation6 [shape = 'u8[4096]{0}', space=vmem, size = 0x1000, scoped, tag = 'input window, operand 1, single buffered']
    #allocation7 [shape = 's32[1]{0}', space=sflag, size = 0x4, scoped, tag = 'scoped memory for tpu_custom_call.1']
    #allocation8 [shape = 'u8[4096]{0}', space=vmem, size = 0x1000, scoped, tag = 'input window, operand 2, single buffered']
    #allocation9 [shape = 'u8[512]{0}', space=vmem, size = 0x400, scoped, tag = 'output window, operand 0, single buffered']
    %9 = vsyncpa [#allocation4], 0
    %10 = vsyncpa [#allocation7], 0
    %11 = vsyncpa [#allocation5], 0
    // Predicated region
    $region2: #{tpu_custom_call.1} parent=1 // pred_check
      _
    $region3: #{tpu_custom_call.1} parent=1 // pred_check_branch
      %13 = sbr.rel (0) target = $region5
    $region4: #{tpu_custom_call.1} parent=1 // pred_region
      %s15 = ssub.s32 128, 128
      %16 = vsyncadd [#allocation4], %s15
      %s18 = sshll.u32 [#allocation3], 4
      %s19 = int_to_ptr.vmem [resolvable:$true] %s18
      %21 = dma.hbm_to_vmem [thread:$0]  %s0, 128, %s19, [#allocation4]
    $region5: #{tpu_custom_call.1} parent=1 // pred_fallthru
      _
    // Predicated region
    $region6: #{tpu_custom_call.1} parent=1 // pred_check
      _
    $region7: #{tpu_custom_call.1} parent=1 // pred_check_branch
      %23 = sbr.rel (0) target = $region9
    $region8: #{tpu_custom_call.1} parent=1 // pred_region
      %s25 = ssub.s32 128, 128
      %26 = vsyncadd [#allocation7], %s25
      %s28 = sshll.u32 [#allocation6], 4
      %s29 = int_to_ptr.vmem [resolvable:$true] %s28
      %31 = dma.hbm_to_vmem [thread:$0]  %s1, 128, %s29, [#allocation7]
    $region9: #{tpu_custom_call.1} parent=1 // pred_fallthru
      _
    // Predicated region
    $region10: #{tpu_custom_call.1} parent=1 // pred_check
      _
    $region11: #{tpu_custom_call.1} parent=1 // pred_check_branch
      %33 = sbr.rel (0) target = $region13
    $region12: #{tpu_custom_call.1} parent=1 // pred_region
      %s35 = ssub.s32 128, 128
      %36 = vsyncadd [#allocation7], %s35
      %s38 = sshll.u32 [#allocation8], 4
      %s39 = int_to_ptr.vmem [resolvable:$true] %s38
      %41 = dma.hbm_to_vmem [thread:$0]  %s2, 128, %s39, [#allocation7]
    $region13: #{tpu_custom_call.1} parent=1 // pred_fallthru
      _
    // Predicated region
    $region14: #{tpu_custom_call.1} parent=1 // pred_check
      _
    $region15: #{tpu_custom_call.1} parent=1 // pred_check_branch
      %43 = sbr.rel (0) target = $region17
    $region16: #{tpu_custom_call.1} parent=1 // pred_region
      _
    $region17: #{tpu_custom_call.1} parent=1 // pred_fallthru
      _
    // Predicated region
    $region18: #{tpu_custom_call.1} parent=1 // pred_check
      _
    $region19: #{tpu_custom_call.1} parent=1 // pred_check_branch
      %45 = sbr.rel (0) target = $region21
    $region20: #{tpu_custom_call.1} parent=1 // pred_region
      %46 = dma.done [#allocation4], 128
    $region21: #{tpu_custom_call.1} parent=1 // pred_fallthru
      _
    // Predicated region
    $region22: #{tpu_custom_call.1} parent=1 // pred_check
      _
    $region23: #{tpu_custom_call.1} parent=1 // pred_check_branch
      %48 = sbr.rel (0) target = $region25
    $region24: #{tpu_custom_call.1} parent=1 // pred_region
      %49 = dma.done [#allocation7], 128
    $region25: #{tpu_custom_call.1} parent=1 // pred_fallthru
      _
    // Predicated region
    $region26: #{tpu_custom_call.1} parent=1 // pred_check
      _
    $region27: #{tpu_custom_call.1} parent=1 // pred_check_branch
      %51 = sbr.rel (0) target = $region29
    $region28: #{tpu_custom_call.1} parent=1 // pred_region
      %52 = dma.done [#allocation7], 128
    $region29: #{tpu_custom_call.1} parent=1 // pred_fallthru
      _
    %p53 = scmp.eq.s32.totalorder 0, 0
    // Predicated region
    $region30: #{tpu_custom_call.1} parent=1 // pred_check
      %p54 = pneg %p53
    $region31: #{tpu_custom_call.1} parent=1 // pred_check_branch
      %56 = sbr.rel (%p54) target = $region33
    $region32: #{tpu_custom_call.1} parent=1 // pred_region
      %vm57 = vcmask 0
      %58 = vst.msk [vmem:[#allocation2] sm:$0x1] %vm57, 0.0
    $region33: #{tpu_custom_call.1} parent=1 // pred_fallthru
      _
    %v59 = vld [vmem:[#allocation3] sm:$0xff]
    %v60 = vld [vmem:[#allocation6] sm:$0xff]
    %v61 = vmul.f32 %v59, 14.285714
    %v62 = vmul.f32 %v60, 14.285714
    %v63 = vld [vmem:[#allocation8] sm:$0xff]
    %v64 = vld [vmem:[%s3] sm:$0xff]
    %vm65 = vcmask 261120
    %v67 = vsel %vm65, %v61, 0
    %v70 = vsel %vm65, %v63, 0
    %72 = vmatprep.subr.mxu0 0.0
    %v73 = vand.u32 %v70, 4294901760
    %74 = vmatpush1.xpose.msra.mxu0 %v73
    %75 = vmatprep.subr.mxu0 0.0
    %76 = vmatpush1.xpose.msra.mxu0 0.0
    %77 = vmatprep.subr.mxu0 0.0
    %78 = vmatpush1.xpose.msra.mxu0 0.0
    %79 = vmatprep.subr.mxu0 0.0
    %80 = vmatpush1.xpose.msra.mxu0 0.0
    %81 = vmatprep.subr.mxu0 0.0
    %82 = vmatpush1.xpose.msra.mxu0 0.0
    %83 = vmatprep.subr.mxu0 0.0
    %84 = vmatpush1.xpose.msra.mxu0 0.0
    %85 = vmatprep.subr.mxu0 0.0
    %86 = vmatpush1.xpose.msra.mxu0 0.0
    %87 = vmatprep.subr.mxu0 0.0
    %88 = vmatpush1.xpose.msra.mxu0 0.0
    %89 = vmatprep.subr.mxu0 0.0
    %90 = vmatpush1.xpose.msra.mxu0 0.0
    %91 = vmatprep.subr.mxu0 0.0
    %92 = vmatpush1.xpose.msra.mxu0 0.0
    %93 = vmatprep.subr.mxu0 0.0
    %94 = vmatpush1.xpose.msra.mxu0 0.0
    %95 = vmatprep.subr.mxu0 0.0
    %96 = vmatpush1.xpose.msra.mxu0 0.0
    %97 = vmatprep.subr.mxu0 0.0
    %98 = vmatpush1.xpose.msra.mxu0 0.0
    %99 = vmatprep.subr.mxu0 0.0
    %100 = vmatpush1.xpose.msra.mxu0 0.0
    %101 = vmatprep.subr.mxu0 0.0
    %102 = vmatpush1.xpose.msra.mxu0 0.0
    %103 = vmatprep.subr.mxu0 0.0
    %104 = vmatpush1.xpose.msra.mxu0 0.0
    %105 = vmatprep.subr.mxu0 0.0
    %106 = vmatpush1.xpose.msra.mxu0 0.0
    %107 = vmatprep.subr.mxu0 0.0
    %108 = vmatpush1.xpose.msra.mxu0 0.0
    %109 = vmatprep.subr.mxu0 0.0
    %110 = vmatpush1.xpose.msra.mxu0 0.0
    %111 = vmatprep.subr.mxu0 0.0
    %112 = vmatpush1.xpose.msra.mxu0 0.0
    %113 = vmatprep.subr.mxu0 0.0
    %114 = vmatpush1.xpose.msra.mxu0 0.0
    %115 = vmatprep.subr.mxu0 0.0
    %116 = vmatpush1.xpose.msra.mxu0 0.0
    %117 = vmatprep.subr.mxu0 0.0
    %118 = vmatpush1.xpose.msra.mxu0 0.0
    %119 = vmatprep.subr.mxu0 0.0
    %120 = vmatpush1.xpose.msra.mxu0 0.0
    %121 = vmatprep.subr.mxu0 0.0
    %122 = vmatpush1.xpose.msra.mxu0 0.0
    %123 = vmatprep.subr.mxu0 0.0
    %124 = vmatpush1.xpose.msra.mxu0 0.0
    %125 = vmatprep.subr.mxu0 0.0
    %126 = vmatpush1.xpose.msra.mxu0 0.0
    %127 = vmatprep.subr.mxu0 0.0
    %128 = vmatpush1.xpose.msra.mxu0 0.0
    %129 = vmatprep.subr.mxu0 0.0
    %130 = vmatpush1.xpose.msra.mxu0 0.0
    %131 = vmatprep.subr.mxu0 0.0
    %132 = vmatpush1.xpose.msra.mxu0 0.0
    %133 = vmatprep.subr.mxu0 0.0
    %134 = vmatpush1.xpose.msra.mxu0 0.0
    %135 = vmatprep.subr.mxu0 0.0
    %136 = vmatpush1.xpose.msra.mxu0 0.0
    %137 = vmatprep.mubr.f32.mxu0 0.0
    %v138 = vand.u32 %v67, 4294901760
    %v139 = vsub.f32 %v67, %v138
    %v140 = vand.u32 %v139, 4294901760
    %v141 = vsub.f32 %v139, %v140
    %v142 = vand.u32 %v141, 4294901760
    %143 = vmatmul.mubr.f32.gmra.mrb[0].mxu0 %v142
    %v144 = vpop.f32.mrb[0].mxu0
    %v145 = vadd.f32 0.0, %v144
    %v146 = vpop.f32.mrb[0].mxu0
    %147 = vdwg.mxu0
    %148 = vmatprep.subr.mxu0 0.0
    %v149 = vand.u32 %v70, 4294901760
    %v150 = vsub.f32 %v70, %v149
    %v151 = vand.u32 %v150, 4294901760
    %v152 = vsub.f32 %v150, %v151
    %v153 = vand.u32 %v152, 4294901760
    %154 = vmatpush1.xpose.msra.mxu0 %v153
    %155 = vmatprep.subr.mxu0 0.0
    %156 = vmatpush1.xpose.msra.mxu0 0.0
    %157 = vmatprep.subr.mxu0 0.0
    %158 = vmatpush1.xpose.msra.mxu0 0.0
    %159 = vmatprep.subr.mxu0 0.0
    %160 = vmatpush1.xpose.msra.mxu0 0.0
    %161 = vmatprep.subr.mxu0 0.0
    %162 = vmatpush1.xpose.msra.mxu0 0.0
    %163 = vmatprep.subr.mxu0 0.0
    %164 = vmatpush1.xpose.msra.mxu0 0.0
    %165 = vmatprep.subr.mxu0 0.0
    %166 = vmatpush1.xpose.msra.mxu0 0.0
    %167 = vmatprep.subr.mxu0 0.0
    %168 = vmatpush1.xpose.msra.mxu0 0.0
    %169 = vmatprep.subr.mxu0 0.0
    %170 = vmatpush1.xpose.msra.mxu0 0.0
    %171 = vmatprep.subr.mxu0 0.0
    %172 = vmatpush1.xpose.msra.mxu0 0.0
    %173 = vmatprep.subr.mxu0 0.0
    %174 = vmatpush1.xpose.msra.mxu0 0.0
    %175 = vmatprep.subr.mxu0 0.0
    %176 = vmatpush1.xpose.msra.mxu0 0.0
    %177 = vmatprep.subr.mxu0 0.0
    %178 = vmatpush1.xpose.msra.mxu0 0.0
    %179 = vmatprep.subr.mxu0 0.0
    %180 = vmatpush1.xpose.msra.mxu0 0.0
    %181 = vmatprep.subr.mxu0 0.0
    %182 = vmatpush1.xpose.msra.mxu0 0.0
    %183 = vmatprep.subr.mxu0 0.0
    %184 = vmatpush1.xpose.msra.mxu0 0.0
    %185 = vmatprep.subr.mxu0 0.0
    %186 = vmatpush1.xpose.msra.mxu0 0.0
    %187 = vmatprep.subr.mxu0 0.0
    %188 = vmatpush1.xpose.msra.mxu0 0.0
    %189 = vmatprep.subr.mxu0 0.0
    %190 = vmatpush1.xpose.msra.mxu0 0.0
    %191 = vmatprep.subr.mxu0 0.0
    %192 = vmatpush1.xpose.msra.mxu0 0.0
    %193 = vmatprep.subr.mxu0 0.0
    %194 = vmatpush1.xpose.msra.mxu0 0.0
    %195 = vmatprep.subr.mxu0 0.0
    %196 = vmatpush1.xpose.msra.mxu0 0.0
    %197 = vmatprep.subr.mxu0 0.0
    %198 = vmatpush1.xpose.msra.mxu0 0.0
    %199 = vmatprep.subr.mxu0 0.0
    %200 = vmatpush1.xpose.msra.mxu0 0.0
    %201 = vmatprep.subr.mxu0 0.0
    %202 = vmatpush1.xpose.msra.mxu0 0.0
    %203 = vmatprep.subr.mxu0 0.0
    %204 = vmatpush1.xpose.msra.mxu0 0.0
    %205 = vmatprep.subr.mxu0 0.0
    %206 = vmatpush1.xpose.msra.mxu0 0.0
    %207 = vmatprep.subr.mxu0 0.0
    %208 = vmatpush1.xpose.msra.mxu0 0.0
    %209 = vmatprep.subr.mxu0 0.0
    %210 = vmatpush1.xpose.msra.mxu0 0.0
    %211 = vmatprep.subr.mxu0 0.0
    %212 = vmatpush1.xpose.msra.mxu0 0.0
    %213 = vmatprep.subr.mxu0 0.0
    %214 = vmatpush1.xpose.msra.mxu0 0.0
    %215 = vmatprep.subr.mxu0 0.0
    %216 = vmatpush1.xpose.msra.mxu0 0.0
    %217 = vmatprep.mubr.f32.mxu0 0.0
    %v218 = vand.u32 %v67, 4294901760
    %219 = vmatmul.mubr.f32.gmra.mrb[0].mxu0 %v218
    %v220 = vpop.f32.mrb[0].mxu0
    %v221 = vadd.f32 %v145, %v220
    %v222 = vpop.f32.mrb[0].mxu0
    %223 = vdwg.mxu0
    %224 = vmatprep.subr.mxu0 0.0
    %v225 = vand.u32 %v70, 4294901760
    %v226 = vsub.f32 %v70, %v225
    %227 = vmatpush1.xpose.msra.mxu0 %v226
    %228 = vmatprep.subr.mxu0 0.0
    %229 = vmatpush1.xpose.msra.mxu0 0.0
    %230 = vmatprep.subr.mxu0 0.0
    %231 = vmatpush1.xpose.msra.mxu0 0.0
    %232 = vmatprep.subr.mxu0 0.0
    %233 = vmatpush1.xpose.msra.mxu0 0.0
    %234 = vmatprep.subr.mxu0 0.0
    %235 = vmatpush1.xpose.msra.mxu0 0.0
    %236 = vmatprep.subr.mxu0 0.0
    %237 = vmatpush1.xpose.msra.mxu0 0.0
    %238 = vmatprep.subr.mxu0 0.0
    %239 = vmatpush1.xpose.msra.mxu0 0.0
    %240 = vmatprep.subr.mxu0 0.0
    %241 = vmatpush1.xpose.msra.mxu0 0.0
    %242 = vmatprep.subr.mxu0 0.0
    %243 = vmatpush1.xpose.msra.mxu0 0.0
    %244 = vmatprep.subr.mxu0 0.0
    %245 = vmatpush1.xpose.msra.mxu0 0.0
    %246 = vmatprep.subr.mxu0 0.0
    %247 = vmatpush1.xpose.msra.mxu0 0.0
    %248 = vmatprep.subr.mxu0 0.0
    %249 = vmatpush1.xpose.msra.mxu0 0.0
    %250 = vmatprep.subr.mxu0 0.0
    %251 = vmatpush1.xpose.msra.mxu0 0.0
    %252 = vmatprep.subr.mxu0 0.0
    %253 = vmatpush1.xpose.msra.mxu0 0.0
    %254 = vmatprep.subr.mxu0 0.0
    %255 = vmatpush1.xpose.msra.mxu0 0.0
    %256 = vmatprep.subr.mxu0 0.0
    %257 = vmatpush1.xpose.msra.mxu0 0.0
    %258 = vmatprep.subr.mxu0 0.0
    %259 = vmatpush1.xpose.msra.mxu0 0.0
    %260 = vmatprep.subr.mxu0 0.0
    %261 = vmatpush1.xpose.msra.mxu0 0.0
    %262 = vmatprep.subr.mxu0 0.0
    %263 = vmatpush1.xpose.msra.mxu0 0.0
    %264 = vmatprep.subr.mxu0 0.0
    %265 = vmatpush1.xpose.msra.mxu0 0.0
    %266 = vmatprep.subr.mxu0 0.0
    %267 = vmatpush1.xpose.msra.mxu0 0.0
    %268 = vmatprep.subr.mxu0 0.0
    %269 = vmatpush1.xpose.msra.mxu0 0.0
    %270 = vmatprep.subr.mxu0 0.0
    %271 = vmatpush1.xpose.msra.mxu0 0.0
    %272 = vmatprep.subr.mxu0 0.0
    %273 = vmatpush1.xpose.msra.mxu0 0.0
    %274 = vmatprep.subr.mxu0 0.0
    %275 = vmatpush1.xpose.msra.mxu0 0.0
    %276 = vmatprep.subr.mxu0 0.0
    %277 = vmatpush1.xpose.msra.mxu0 0.0
    %278 = vmatprep.subr.mxu0 0.0
    %279 = vmatpush1.xpose.msra.mxu0 0.0
    %280 = vmatprep.subr.mxu0 0.0
    %281 = vmatpush1.xpose.msra.mxu0 0.0
    %282 = vmatprep.subr.mxu0 0.0
    %283 = vmatpush1.xpose.msra.mxu0 0.0
    %284 = vmatprep.subr.mxu0 0.0
    %285 = vmatpush1.xpose.msra.mxu0 0.0
    %286 = vmatprep.subr.mxu0 0.0
    %287 = vmatpush1.xpose.msra.mxu0 0.0
    %288 = vmatprep.subr.mxu0 0.0
    %289 = vmatpush1.xpose.msra.mxu0 0.0
    %290 = vmatprep.mubr.f32.mxu0 0.0
    %v291 = vand.u32 %v67, 4294901760
    %v292 = vsub.f32 %v67, %v291
    %293 = vmatmul.mubr.f32.gmra.mrb[0].mxu0 %v292
    %v294 = vpop.f32.mrb[0].mxu0
    %v295 = vadd.f32 %v221, %v294
    %v296 = vpop.f32.mrb[0].mxu0
    %297 = vdwg.mxu0
    %298 = vmatprep.subr.mxu0 0.0
    %v299 = vand.u32 %v70, 4294901760
    %300 = vmatpush1.xpose.msra.mxu0 %v299
    %301 = vmatprep.subr.mxu0 0.0
    %302 = vmatpush1.xpose.msra.mxu0 0.0
    %303 = vmatprep.subr.mxu0 0.0
    %304 = vmatpush1.xpose.msra.mxu0 0.0
    %305 = vmatprep.subr.mxu0 0.0
    %306 = vmatpush1.xpose.msra.mxu0 0.0
    %307 = vmatprep.subr.mxu0 0.0
    %308 = vmatpush1.xpose.msra.mxu0 0.0
    %309 = vmatprep.subr.mxu0 0.0
    %310 = vmatpush1.xpose.msra.mxu0 0.0
    %311 = vmatprep.subr.mxu0 0.0
    %312 = vmatpush1.xpose.msra.mxu0 0.0
    %313 = vmatprep.subr.mxu0 0.0
    %314 = vmatpush1.xpose.msra.mxu0 0.0
    %315 = vmatprep.subr.mxu0 0.0
    %316 = vmatpush1.xpose.msra.mxu0 0.0
    %317 = vmatprep.subr.mxu0 0.0
    %318 = vmatpush1.xpose.msra.mxu0 0.0
    %319 = vmatprep.subr.mxu0 0.0
    %320 = vmatpush1.xpose.msra.mxu0 0.0
    %321 = vmatprep.subr.mxu0 0.0
    %322 = vmatpush1.xpose.msra.mxu0 0.0
    %323 = vmatprep.subr.mxu0 0.0
    %324 = vmatpush1.xpose.msra.mxu0 0.0
    %325 = vmatprep.subr.mxu0 0.0
    %326 = vmatpush1.xpose.msra.mxu0 0.0
    %327 = vmatprep.subr.mxu0 0.0
    %328 = vmatpush1.xpose.msra.mxu0 0.0
    %329 = vmatprep.subr.mxu0 0.0
    %330 = vmatpush1.xpose.msra.mxu0 0.0
    %331 = vmatprep.subr.mxu0 0.0
    %332 = vmatpush1.xpose.msra.mxu0 0.0
    %333 = vmatprep.subr.mxu0 0.0
    %334 = vmatpush1.xpose.msra.mxu0 0.0
    %335 = vmatprep.subr.mxu0 0.0
    %336 = vmatpush1.xpose.msra.mxu0 0.0
    %337 = vmatprep.subr.mxu0 0.0
    %338 = vmatpush1.xpose.msra.mxu0 0.0
    %339 = vmatprep.subr.mxu0 0.0
    %340 = vmatpush1.xpose.msra.mxu0 0.0
    %341 = vmatprep.subr.mxu0 0.0
    %342 = vmatpush1.xpose.msra.mxu0 0.0
    %343 = vmatprep.subr.mxu0 0.0
    %344 = vmatpush1.xpose.msra.mxu0 0.0
    %345 = vmatprep.subr.mxu0 0.0
    %346 = vmatpush1.xpose.msra.mxu0 0.0
    %347 = vmatprep.subr.mxu0 0.0
    %348 = vmatpush1.xpose.msra.mxu0 0.0
    %349 = vmatprep.subr.mxu0 0.0
    %350 = vmatpush1.xpose.msra.mxu0 0.0
    %351 = vmatprep.subr.mxu0 0.0
    %352 = vmatpush1.xpose.msra.mxu0 0.0
    %353 = vmatprep.subr.mxu0 0.0
    %354 = vmatpush1.xpose.msra.mxu0 0.0
    %355 = vmatprep.subr.mxu0 0.0
    %356 = vmatpush1.xpose.msra.mxu0 0.0
    %357 = vmatprep.subr.mxu0 0.0
    %358 = vmatpush1.xpose.msra.mxu0 0.0
    %359 = vmatprep.subr.mxu0 0.0
    %360 = vmatpush1.xpose.msra.mxu0 0.0
    %361 = vmatprep.subr.mxu0 0.0
    %362 = vmatpush1.xpose.msra.mxu0 0.0
    %363 = vmatprep.mubr.f32.mxu0 0.0
    %v364 = vand.u32 %v67, 4294901760
    %v365 = vsub.f32 %v67, %v364
    %v366 = vand.u32 %v365, 4294901760
    %367 = vmatmul.mubr.f32.gmra.mrb[0].mxu0 %v366
    %v368 = vpop.f32.mrb[0].mxu0
    %v369 = vadd.f32 %v295, %v368
    %v370 = vpop.f32.mrb[0].mxu0
    %371 = vdwg.mxu0
    %372 = vmatprep.subr.mxu0 0.0
    %v373 = vand.u32 %v70, 4294901760
    %v374 = vsub.f32 %v70, %v373
    %v375 = vand.u32 %v374, 4294901760
    %376 = vmatpush1.xpose.msra.mxu0 %v375
    %377 = vmatprep.subr.mxu0 0.0
    %378 = vmatpush1.xpose.msra.mxu0 0.0
    %379 = vmatprep.subr.mxu0 0.0
    %380 = vmatpush1.xpose.msra.mxu0 0.0
    %381 = vmatprep.subr.mxu0 0.0
    %382 = vmatpush1.xpose.msra.mxu0 0.0
    %383 = vmatprep.subr.mxu0 0.0
    %384 = vmatpush1.xpose.msra.mxu0 0.0
    %385 = vmatprep.subr.mxu0 0.0
    %386 = vmatpush1.xpose.msra.mxu0 0.0
    %387 = vmatprep.subr.mxu0 0.0
    %388 = vmatpush1.xpose.msra.mxu0 0.0
    %389 = vmatprep.subr.mxu0 0.0
    %390 = vmatpush1.xpose.msra.mxu0 0.0
    %391 = vmatprep.subr.mxu0 0.0
    %392 = vmatpush1.xpose.msra.mxu0 0.0
    %393 = vmatprep.subr.mxu0 0.0
    %394 = vmatpush1.xpose.msra.mxu0 0.0
    %395 = vmatprep.subr.mxu0 0.0
    %396 = vmatpush1.xpose.msra.mxu0 0.0
    %397 = vmatprep.subr.mxu0 0.0
    %398 = vmatpush1.xpose.msra.mxu0 0.0
    %399 = vmatprep.subr.mxu0 0.0
    %400 = vmatpush1.xpose.msra.mxu0 0.0
    %401 = vmatprep.subr.mxu0 0.0
    %402 = vmatpush1.xpose.msra.mxu0 0.0
    %403 = vmatprep.subr.mxu0 0.0
    %404 = vmatpush1.xpose.msra.mxu0 0.0
    %405 = vmatprep.subr.mxu0 0.0
    %406 = vmatpush1.xpose.msra.mxu0 0.0
    %407 = vmatprep.subr.mxu0 0.0
    %408 = vmatpush1.xpose.msra.mxu0 0.0
    %409 = vmatprep.subr.mxu0 0.0
    %410 = vmatpush1.xpose.msra.mxu0 0.0
    %411 = vmatprep.subr.mxu0 0.0
    %412 = vmatpush1.xpose.msra.mxu0 0.0
    %413 = vmatprep.subr.mxu0 0.0
    %414 = vmatpush1.xpose.msra.mxu0 0.0
    %415 = vmatprep.subr.mxu0 0.0
    %416 = vmatpush1.xpose.msra.mxu0 0.0
    %417 = vmatprep.subr.mxu0 0.0
    %418 = vmatpush1.xpose.msra.mxu0 0.0
    %419 = vmatprep.subr.mxu0 0.0
    %420 = vmatpush1.xpose.msra.mxu0 0.0
    %421 = vmatprep.subr.mxu0 0.0
    %422 = vmatpush1.xpose.msra.mxu0 0.0
    %423 = vmatprep.subr.mxu0 0.0
    %424 = vmatpush1.xpose.msra.mxu0 0.0
    %425 = vmatprep.subr.mxu0 0.0
    %426 = vmatpush1.xpose.msra.mxu0 0.0
    %427 = vmatprep.subr.mxu0 0.0
    %428 = vmatpush1.xpose.msra.mxu0 0.0
    %429 = vmatprep.subr.mxu0 0.0
    %430 = vmatpush1.xpose.msra.mxu0 0.0
    %431 = vmatprep.subr.mxu0 0.0
    %432 = vmatpush1.xpose.msra.mxu0 0.0
    %433 = vmatprep.subr.mxu0 0.0
    %434 = vmatpush1.xpose.msra.mxu0 0.0
    %435 = vmatprep.subr.mxu0 0.0
    %436 = vmatpush1.xpose.msra.mxu0 0.0
    %437 = vmatprep.subr.mxu0 0.0
    %438 = vmatpush1.xpose.msra.mxu0 0.0
    %439 = vmatprep.mubr.f32.mxu0 0.0
    %v440 = vand.u32 %v67, 4294901760
    %441 = vmatmul.mubr.f32.gmra.mrb[0].mxu0 %v440
    %v442 = vpop.f32.mrb[0].mxu0
    %v443 = vadd.f32 %v369, %v442
    %v444 = vpop.f32.mrb[0].mxu0
    %445 = vdwg.mxu0
    %446 = vmatprep.subr.mxu0 0.0
    %v447 = vand.u32 %v70, 4294901760
    %448 = vmatpush1.xpose.msra.mxu0 %v447
    %449 = vmatprep.subr.mxu0 0.0
    %450 = vmatpush1.xpose.msra.mxu0 0.0
    %451 = vmatprep.subr.mxu0 0.0
    %452 = vmatpush1.xpose.msra.mxu0 0.0
    %453 = vmatprep.subr.mxu0 0.0
    %454 = vmatpush1.xpose.msra.mxu0 0.0
    %455 = vmatprep.subr.mxu0 0.0
    %456 = vmatpush1.xpose.msra.mxu0 0.0
    %457 = vmatprep.subr.mxu0 0.0
    %458 = vmatpush1.xpose.msra.mxu0 0.0
    %459 = vmatprep.subr.mxu0 0.0
    %460 = vmatpush1.xpose.msra.mxu0 0.0
    %461 = vmatprep.subr.mxu0 0.0
    %462 = vmatpush1.xpose.msra.mxu0 0.0
    %463 = vmatprep.subr.mxu0 0.0
    %464 = vmatpush1.xpose.msra.mxu0 0.0
    %465 = vmatprep.subr.mxu0 0.0
    %466 = vmatpush1.xpose.msra.mxu0 0.0
    %467 = vmatprep.subr.mxu0 0.0
    %468 = vmatpush1.xpose.msra.mxu0 0.0
    %469 = vmatprep.subr.mxu0 0.0
    %470 = vmatpush1.xpose.msra.mxu0 0.0
    %471 = vmatprep.subr.mxu0 0.0
    %472 = vmatpush1.xpose.msra.mxu0 0.0
    %473 = vmatprep.subr.mxu0 0.0
    %474 = vmatpush1.xpose.msra.mxu0 0.0
    %475 = vmatprep.subr.mxu0 0.0
    %476 = vmatpush1.xpose.msra.mxu0 0.0
    %477 = vmatprep.subr.mxu0 0.0
    %478 = vmatpush1.xpose.msra.mxu0 0.0
    %479 = vmatprep.subr.mxu0 0.0
    %480 = vmatpush1.xpose.msra.mxu0 0.0
    %481 = vmatprep.subr.mxu0 0.0
    %482 = vmatpush1.xpose.msra.mxu0 0.0
    %483 = vmatprep.subr.mxu0 0.0
    %484 = vmatpush1.xpose.msra.mxu0 0.0
    %485 = vmatprep.subr.mxu0 0.0
    %486 = vmatpush1.xpose.msra.mxu0 0.0
    %487 = vmatprep.subr.mxu0 0.0
    %488 = vmatpush1.xpose.msra.mxu0 0.0
    %489 = vmatprep.subr.mxu0 0.0
    %490 = vmatpush1.xpose.msra.mxu0 0.0
    %491 = vmatprep.subr.mxu0 0.0
    %492 = vmatpush1.xpose.msra.mxu0 0.0
    %493 = vmatprep.subr.mxu0 0.0
    %494 = vmatpush1.xpose.msra.mxu0 0.0
    %495 = vmatprep.subr.mxu0 0.0
    %496 = vmatpush1.xpose.msra.mxu0 0.0
    %497 = vmatprep.subr.mxu0 0.0
    %498 = vmatpush1.xpose.msra.mxu0 0.0
    %499 = vmatprep.subr.mxu0 0.0
    %500 = vmatpush1.xpose.msra.mxu0 0.0
    %501 = vmatprep.subr.mxu0 0.0
    %502 = vmatpush1.xpose.msra.mxu0 0.0
    %503 = vmatprep.subr.mxu0 0.0
    %504 = vmatpush1.xpose.msra.mxu0 0.0
    %505 = vmatprep.subr.mxu0 0.0
    %506 = vmatpush1.xpose.msra.mxu0 0.0
    %507 = vmatprep.subr.mxu0 0.0
    %508 = vmatpush1.xpose.msra.mxu0 0.0
    %509 = vmatprep.subr.mxu0 0.0
    %510 = vmatpush1.xpose.msra.mxu0 0.0
    %511 = vmatprep.mubr.f32.mxu0 0.0
    %v512 = vand.u32 %v67, 4294901760
    %513 = vmatmul.mubr.f32.gmra.mrb[0].mxu0 %v512
    %v514 = vpop.f32.mrb[0].mxu0
    %v515 = vadd.f32 %v443, %v514
    %v516 = vpop.f32.mrb[0].mxu0
    %517 = vdwg.mxu0
    %v519 = vsel %vm65, %v64, 0
    %521 = vmatprep.subr.mxu0 0.0
    %v522 = vand.u32 %v519, 4294901760
    %523 = vmatpush1.xpose.msra.mxu0 %v522
    %524 = vmatprep.subr.mxu0 0.0
    %525 = vmatpush1.xpose.msra.mxu0 0.0
    %526 = vmatprep.subr.mxu0 0.0
    %527 = vmatpush1.xpose.msra.mxu0 0.0
    %528 = vmatprep.subr.mxu0 0.0
    %529 = vmatpush1.xpose.msra.mxu0 0.0
    %530 = vmatprep.subr.mxu0 0.0
    %531 = vmatpush1.xpose.msra.mxu0 0.0
    %532 = vmatprep.subr.mxu0 0.0
    %533 = vmatpush1.xpose.msra.mxu0 0.0
    %534 = vmatprep.subr.mxu0 0.0
    %535 = vmatpush1.xpose.msra.mxu0 0.0
    %536 = vmatprep.subr.mxu0 0.0
    %537 = vmatpush1.xpose.msra.mxu0 0.0
    %538 = vmatprep.subr.mxu0 0.0
    %539 = vmatpush1.xpose.msra.mxu0 0.0
    %540 = vmatprep.subr.mxu0 0.0
    %541 = vmatpush1.xpose.msra.mxu0 0.0
    %542 = vmatprep.subr.mxu0 0.0
    %543 = vmatpush1.xpose.msra.mxu0 0.0
    %544 = vmatprep.subr.mxu0 0.0
    %545 = vmatpush1.xpose.msra.mxu0 0.0
    %546 = vmatprep.subr.mxu0 0.0
    %547 = vmatpush1.xpose.msra.mxu0 0.0
    %548 = vmatprep.subr.mxu0 0.0
    %549 = vmatpush1.xpose.msra.mxu0 0.0
    %550 = vmatprep.subr.mxu0 0.0
    %551 = vmatpush1.xpose.msra.mxu0 0.0
    %552 = vmatprep.subr.mxu0 0.0
    %553 = vmatpush1.xpose.msra.mxu0 0.0
    %554 = vmatprep.subr.mxu0 0.0
    %555 = vmatpush1.xpose.msra.mxu0 0.0
    %556 = vmatprep.subr.mxu0 0.0
    %557 = vmatpush1.xpose.msra.mxu0 0.0
    %558 = vmatprep.subr.mxu0 0.0
    %559 = vmatpush1.xpose.msra.mxu0 0.0
    %560 = vmatprep.subr.mxu0 0.0
    %561 = vmatpush1.xpose.msra.mxu0 0.0
    %562 = vmatprep.subr.mxu0 0.0
    %563 = vmatpush1.xpose.msra.mxu0 0.0
    %564 = vmatprep.subr.mxu0 0.0
    %565 = vmatpush1.xpose.msra.mxu0 0.0
    %566 = vmatprep.subr.mxu0 0.0
    %567 = vmatpush1.xpose.msra.mxu0 0.0
    %568 = vmatprep.subr.mxu0 0.0
    %569 = vmatpush1.xpose.msra.mxu0 0.0
    %570 = vmatprep.subr.mxu0 0.0
    %571 = vmatpush1.xpose.msra.mxu0 0.0
    %572 = vmatprep.subr.mxu0 0.0
    %573 = vmatpush1.xpose.msra.mxu0 0.0
    %574 = vmatprep.subr.mxu0 0.0
    %575 = vmatpush1.xpose.msra.mxu0 0.0
    %576 = vmatprep.subr.mxu0 0.0
    %577 = vmatpush1.xpose.msra.mxu0 0.0
    %578 = vmatprep.subr.mxu0 0.0
    %579 = vmatpush1.xpose.msra.mxu0 0.0
    %580 = vmatprep.subr.mxu0 0.0
    %581 = vmatpush1.xpose.msra.mxu0 0.0
    %582 = vmatprep.subr.mxu0 0.0
    %583 = vmatpush1.xpose.msra.mxu0 0.0
    %584 = vmatprep.subr.mxu0 0.0
    %585 = vmatpush1.xpose.msra.mxu0 0.0
    %586 = vmatprep.mubr.f32.mxu0 0.0
    %v587 = vand.u32 %v67, 4294901760
    %v588 = vsub.f32 %v67, %v587
    %v589 = vand.u32 %v588, 4294901760
    %v590 = vsub.f32 %v588, %v589
    %v591 = vand.u32 %v590, 4294901760
    %592 = vmatmul.mubr.f32.gmra.mrb[0].mxu0 %v591
    %v593 = vpop.f32.mrb[0].mxu0
    %v594 = vadd.f32 0.0, %v593
    %v595 = vpop.f32.mrb[0].mxu0
    %596 = vdwg.mxu0
    %597 = vmatprep.subr.mxu0 0.0
    %v598 = vand.u32 %v519, 4294901760
    %v599 = vsub.f32 %v519, %v598
    %v600 = vand.u32 %v599, 4294901760
    %v601 = vsub.f32 %v599, %v600
    %v602 = vand.u32 %v601, 4294901760
    %603 = vmatpush1.xpose.msra.mxu0 %v602
    %604 = vmatprep.subr.mxu0 0.0
    %605 = vmatpush1.xpose.msra.mxu0 0.0
    %606 = vmatprep.subr.mxu0 0.0
    %607 = vmatpush1.xpose.msra.mxu0 0.0
    %608 = vmatprep.subr.mxu0 0.0
    %609 = vmatpush1.xpose.msra.mxu0 0.0
    %610 = vmatprep.subr.mxu0 0.0
    %611 = vmatpush1.xpose.msra.mxu0 0.0
    %612 = vmatprep.subr.mxu0 0.0
    %613 = vmatpush1.xpose.msra.mxu0 0.0
    %614 = vmatprep.subr.mxu0 0.0
    %615 = vmatpush1.xpose.msra.mxu0 0.0
    %616 = vmatprep.subr.mxu0 0.0
    %617 = vmatpush1.xpose.msra.mxu0 0.0
    %618 = vmatprep.subr.mxu0 0.0
    %619 = vmatpush1.xpose.msra.mxu0 0.0
    %620 = vmatprep.subr.mxu0 0.0
    %621 = vmatpush1.xpose.msra.mxu0 0.0
    %622 = vmatprep.subr.mxu0 0.0
    %623 = vmatpush1.xpose.msra.mxu0 0.0
    %624 = vmatprep.subr.mxu0 0.0
    %625 = vmatpush1.xpose.msra.mxu0 0.0
    %626 = vmatprep.subr.mxu0 0.0
    %627 = vmatpush1.xpose.msra.mxu0 0.0
    %628 = vmatprep.subr.mxu0 0.0
    %629 = vmatpush1.xpose.msra.mxu0 0.0
    %630 = vmatprep.subr.mxu0 0.0
    %631 = vmatpush1.xpose.msra.mxu0 0.0
    %632 = vmatprep.subr.mxu0 0.0
    %633 = vmatpush1.xpose.msra.mxu0 0.0
    %634 = vmatprep.subr.mxu0 0.0
    %635 = vmatpush1.xpose.msra.mxu0 0.0
    %636 = vmatprep.subr.mxu0 0.0
    %637 = vmatpush1.xpose.msra.mxu0 0.0
    %638 = vmatprep.subr.mxu0 0.0
    %639 = vmatpush1.xpose.msra.mxu0 0.0
    %640 = vmatprep.subr.mxu0 0.0
    %641 = vmatpush1.xpose.msra.mxu0 0.0
    %642 = vmatprep.subr.mxu0 0.0
    %643 = vmatpush1.xpose.msra.mxu0 0.0
    %644 = vmatprep.subr.mxu0 0.0
    %645 = vmatpush1.xpose.msra.mxu0 0.0
    %646 = vmatprep.subr.mxu0 0.0
    %647 = vmatpush1.xpose.msra.mxu0 0.0
    %648 = vmatprep.subr.mxu0 0.0
    %649 = vmatpush1.xpose.msra.mxu0 0.0
    %650 = vmatprep.subr.mxu0 0.0
    %651 = vmatpush1.xpose.msra.mxu0 0.0
    %652 = vmatprep.subr.mxu0 0.0
    %653 = vmatpush1.xpose.msra.mxu0 0.0
    %654 = vmatprep.subr.mxu0 0.0
    %655 = vmatpush1.xpose.msra.mxu0 0.0
    %656 = vmatprep.subr.mxu0 0.0
    %657 = vmatpush1.xpose.msra.mxu0 0.0
    %658 = vmatprep.subr.mxu0 0.0
    %659 = vmatpush1.xpose.msra.mxu0 0.0
    %660 = vmatprep.subr.mxu0 0.0
    %661 = vmatpush1.xpose.msra.mxu0 0.0
    %662 = vmatprep.subr.mxu0 0.0
    %663 = vmatpush1.xpose.msra.mxu0 0.0
    %664 = vmatprep.subr.mxu0 0.0
    %665 = vmatpush1.xpose.msra.mxu0 0.0
    %666 = vmatprep.mubr.f32.mxu0 0.0
    %v667 = vand.u32 %v67, 4294901760
    %668 = vmatmul.mubr.f32.gmra.mrb[0].mxu0 %v667
    %v669 = vpop.f32.mrb[0].mxu0
    %v670 = vadd.f32 %v594, %v669
    %v671 = vpop.f32.mrb[0].mxu0
    %672 = vdwg.mxu0
    %673 = vmatprep.subr.mxu0 0.0
    %v674 = vand.u32 %v519, 4294901760
    %v675 = vsub.f32 %v519, %v674
    %676 = vmatpush1.xpose.msra.mxu0 %v675
    %677 = vmatprep.subr.mxu0 0.0
    %678 = vmatpush1.xpose.msra.mxu0 0.0
    %679 = vmatprep.subr.mxu0 0.0
    %680 = vmatpush1.xpose.msra.mxu0 0.0
    %681 = vmatprep.subr.mxu0 0.0
    %682 = vmatpush1.xpose.msra.mxu0 0.0
    %683 = vmatprep.subr.mxu0 0.0
    %684 = vmatpush1.xpose.msra.mxu0 0.0
    %685 = vmatprep.subr.mxu0 0.0
    %686 = vmatpush1.xpose.msra.mxu0 0.0
    %687 = vmatprep.subr.mxu0 0.0
    %688 = vmatpush1.xpose.msra.mxu0 0.0
    %689 = vmatprep.subr.mxu0 0.0
    %690 = vmatpush1.xpose.msra.mxu0 0.0
    %691 = vmatprep.subr.mxu0 0.0
    %692 = vmatpush1.xpose.msra.mxu0 0.0
    %693 = vmatprep.subr.mxu0 0.0
    %694 = vmatpush1.xpose.msra.mxu0 0.0
    %695 = vmatprep.subr.mxu0 0.0
    %696 = vmatpush1.xpose.msra.mxu0 0.0
    %697 = vmatprep.subr.mxu0 0.0
    %698 = vmatpush1.xpose.msra.mxu0 0.0
    %699 = vmatprep.subr.mxu0 0.0
    %700 = vmatpush1.xpose.msra.mxu0 0.0
    %701 = vmatprep.subr.mxu0 0.0
    %702 = vmatpush1.xpose.msra.mxu0 0.0
    %703 = vmatprep.subr.mxu0 0.0
    %704 = vmatpush1.xpose.msra.mxu0 0.0
    %705 = vmatprep.subr.mxu0 0.0
    %706 = vmatpush1.xpose.msra.mxu0 0.0
    %707 = vmatprep.subr.mxu0 0.0
    %708 = vmatpush1.xpose.msra.mxu0 0.0
    %709 = vmatprep.subr.mxu0 0.0
    %710 = vmatpush1.xpose.msra.mxu0 0.0
    %711 = vmatprep.subr.mxu0 0.0
    %712 = vmatpush1.xpose.msra.mxu0 0.0
    %713 = vmatprep.subr.mxu0 0.0
    %714 = vmatpush1.xpose.msra.mxu0 0.0
    %715 = vmatprep.subr.mxu0 0.0
    %716 = vmatpush1.xpose.msra.mxu0 0.0
    %717 = vmatprep.subr.mxu0 0.0
    %718 = vmatpush1.xpose.msra.mxu0 0.0
    %719 = vmatprep.subr.mxu0 0.0
    %720 = vmatpush1.xpose.msra.mxu0 0.0
    %721 = vmatprep.subr.mxu0 0.0
    %722 = vmatpush1.xpose.msra.mxu0 0.0
    %723 = vmatprep.subr.mxu0 0.0
    %724 = vmatpush1.xpose.msra.mxu0 0.0
    %725 = vmatprep.subr.mxu0 0.0
    %726 = vmatpush1.xpose.msra.mxu0 0.0
    %727 = vmatprep.subr.mxu0 0.0
    %728 = vmatpush1.xpose.msra.mxu0 0.0
    %729 = vmatprep.subr.mxu0 0.0
    %730 = vmatpush1.xpose.msra.mxu0 0.0
    %731 = vmatprep.subr.mxu0 0.0
    %732 = vmatpush1.xpose.msra.mxu0 0.0
    %733 = vmatprep.subr.mxu0 0.0
    %734 = vmatpush1.xpose.msra.mxu0 0.0
    %735 = vmatprep.subr.mxu0 0.0
    %736 = vmatpush1.xpose.msra.mxu0 0.0
    %737 = vmatprep.subr.mxu0 0.0
    %738 = vmatpush1.xpose.msra.mxu0 0.0
    %739 = vmatprep.mubr.f32.mxu0 0.0
    %v740 = vand.u32 %v67, 4294901760
    %v741 = vsub.f32 %v67, %v740
    %742 = vmatmul.mubr.f32.gmra.mrb[0].mxu0 %v741
    %v743 = vpop.f32.mrb[0].mxu0
    %v744 = vadd.f32 %v670, %v743
    %v745 = vpop.f32.mrb[0].mxu0
    %746 = vdwg.mxu0
    %747 = vmatprep.subr.mxu0 0.0
    %v748 = vand.u32 %v519, 4294901760
    %749 = vmatpush1.xpose.msra.mxu0 %v748
    %750 = vmatprep.subr.mxu0 0.0
    %751 = vmatpush1.xpose.msra.mxu0 0.0
    %752 = vmatprep.subr.mxu0 0.0
    %753 = vmatpush1.xpose.msra.mxu0 0.0
    %754 = vmatprep.subr.mxu0 0.0
    %755 = vmatpush1.xpose.msra.mxu0 0.0
    %756 = vmatprep.subr.mxu0 0.0
    %757 = vmatpush1.xpose.msra.mxu0 0.0
    %758 = vmatprep.subr.mxu0 0.0
    %759 = vmatpush1.xpose.msra.mxu0 0.0
    %760 = vmatprep.subr.mxu0 0.0
    %761 = vmatpush1.xpose.msra.mxu0 0.0
    %762 = vmatprep.subr.mxu0 0.0
    %763 = vmatpush1.xpose.msra.mxu0 0.0
    %764 = vmatprep.subr.mxu0 0.0
    %765 = vmatpush1.xpose.msra.mxu0 0.0
    %766 = vmatprep.subr.mxu0 0.0
    %767 = vmatpush1.xpose.msra.mxu0 0.0
    %768 = vmatprep.subr.mxu0 0.0
    %769 = vmatpush1.xpose.msra.mxu0 0.0
    %770 = vmatprep.subr.mxu0 0.0
    %771 = vmatpush1.xpose.msra.mxu0 0.0
    %772 = vmatprep.subr.mxu0 0.0
    %773 = vmatpush1.xpose.msra.mxu0 0.0
    %774 = vmatprep.subr.mxu0 0.0
    %775 = vmatpush1.xpose.msra.mxu0 0.0
    %776 = vmatprep.subr.mxu0 0.0
    %777 = vmatpush1.xpose.msra.mxu0 0.0
    %778 = vmatprep.subr.mxu0 0.0
    %779 = vmatpush1.xpose.msra.mxu0 0.0
    %780 = vmatprep.subr.mxu0 0.0
    %781 = vmatpush1.xpose.msra.mxu0 0.0
    %782 = vmatprep.subr.mxu0 0.0
    %783 = vmatpush1.xpose.msra.mxu0 0.0
    %784 = vmatprep.subr.mxu0 0.0
    %785 = vmatpush1.xpose.msra.mxu0 0.0
    %786 = vmatprep.subr.mxu0 0.0
    %787 = vmatpush1.xpose.msra.mxu0 0.0
    %788 = vmatprep.subr.mxu0 0.0
    %789 = vmatpush1.xpose.msra.mxu0 0.0
    %790 = vmatprep.subr.mxu0 0.0
    %791 = vmatpush1.xpose.msra.mxu0 0.0
    %792 = vmatprep.subr.mxu0 0.0
    %793 = vmatpush1.xpose.msra.mxu0 0.0
    %794 = vmatprep.subr.mxu0 0.0
    %795 = vmatpush1.xpose.msra.mxu0 0.0
    %796 = vmatprep.subr.mxu0 0.0
    %797 = vmatpush1.xpose.msra.mxu0 0.0
    %798 = vmatprep.subr.mxu0 0.0
    %799 = vmatpush1.xpose.msra.mxu0 0.0
    %800 = vmatprep.subr.mxu0 0.0
    %801 = vmatpush1.xpose.msra.mxu0 0.0
    %802 = vmatprep.subr.mxu0 0.0
    %803 = vmatpush1.xpose.msra.mxu0 0.0
    %804 = vmatprep.subr.mxu0 0.0
    %805 = vmatpush1.xpose.msra.mxu0 0.0
    %806 = vmatprep.subr.mxu0 0.0
    %807 = vmatpush1.xpose.msra.mxu0 0.0
    %808 = vmatprep.subr.mxu0 0.0
    %809 = vmatpush1.xpose.msra.mxu0 0.0
    %810 = vmatprep.subr.mxu0 0.0
    %811 = vmatpush1.xpose.msra.mxu0 0.0
    %812 = vmatprep.mubr.f32.mxu0 0.0
    %v813 = vand.u32 %v67, 4294901760
    %v814 = vsub.f32 %v67, %v813
    %v815 = vand.u32 %v814, 4294901760
    %816 = vmatmul.mubr.f32.gmra.mrb[0].mxu0 %v815
    %v817 = vpop.f32.mrb[0].mxu0
    %v818 = vadd.f32 %v744, %v817
    %v819 = vpop.f32.mrb[0].mxu0
    %820 = vdwg.mxu0
    %821 = vmatprep.subr.mxu0 0.0
    %v822 = vand.u32 %v519, 4294901760
    %v823 = vsub.f32 %v519, %v822
    %v824 = vand.u32 %v823, 4294901760
    %825 = vmatpush1.xpose.msra.mxu0 %v824
    %826 = vmatprep.subr.mxu0 0.0
    %827 = vmatpush1.xpose.msra.mxu0 0.0
    %828 = vmatprep.subr.mxu0 0.0
    %829 = vmatpush1.xpose.msra.mxu0 0.0
    %830 = vmatprep.subr.mxu0 0.0
    %831 = vmatpush1.xpose.msra.mxu0 0.0
    %832 = vmatprep.subr.mxu0 0.0
    %833 = vmatpush1.xpose.msra.mxu0 0.0
    %834 = vmatprep.subr.mxu0 0.0
    %835 = vmatpush1.xpose.msra.mxu0 0.0
    %836 = vmatprep.subr.mxu0 0.0
    %837 = vmatpush1.xpose.msra.mxu0 0.0
    %838 = vmatprep.subr.mxu0 0.0
    %839 = vmatpush1.xpose.msra.mxu0 0.0
    %840 = vmatprep.subr.mxu0 0.0
    %841 = vmatpush1.xpose.msra.mxu0 0.0
    %842 = vmatprep.subr.mxu0 0.0
    %843 = vmatpush1.xpose.msra.mxu0 0.0
    %844 = vmatprep.subr.mxu0 0.0
    %845 = vmatpush1.xpose.msra.mxu0 0.0
    %846 = vmatprep.subr.mxu0 0.0
    %847 = vmatpush1.xpose.msra.mxu0 0.0
    %848 = vmatprep.subr.mxu0 0.0
    %849 = vmatpush1.xpose.msra.mxu0 0.0
    %850 = vmatprep.subr.mxu0 0.0
    %851 = vmatpush1.xpose.msra.mxu0 0.0
    %852 = vmatprep.subr.mxu0 0.0
    %853 = vmatpush1.xpose.msra.mxu0 0.0
    %854 = vmatprep.subr.mxu0 0.0
    %855 = vmatpush1.xpose.msra.mxu0 0.0
    %856 = vmatprep.subr.mxu0 0.0
    %857 = vmatpush1.xpose.msra.mxu0 0.0
    %858 = vmatprep.subr.mxu0 0.0
    %859 = vmatpush1.xpose.msra.mxu0 0.0
    %860 = vmatprep.subr.mxu0 0.0
    %861 = vmatpush1.xpose.msra.mxu0 0.0
    %862 = vmatprep.subr.mxu0 0.0
    %863 = vmatpush1.xpose.msra.mxu0 0.0
    %864 = vmatprep.subr.mxu0 0.0
    %865 = vmatpush1.xpose.msra.mxu0 0.0
    %866 = vmatprep.subr.mxu0 0.0
    %867 = vmatpush1.xpose.msra.mxu0 0.0
    %868 = vmatprep.subr.mxu0 0.0
    %869 = vmatpush1.xpose.msra.mxu0 0.0
    %870 = vmatprep.subr.mxu0 0.0
    %871 = vmatpush1.xpose.msra.mxu0 0.0
    %872 = vmatprep.subr.mxu0 0.0
    %873 = vmatpush1.xpose.msra.mxu0 0.0
    %874 = vmatprep.subr.mxu0 0.0
    %875 = vmatpush1.xpose.msra.mxu0 0.0
    %876 = vmatprep.subr.mxu0 0.0
    %877 = vmatpush1.xpose.msra.mxu0 0.0
    %878 = vmatprep.subr.mxu0 0.0
    %879 = vmatpush1.xpose.msra.mxu0 0.0
    %880 = vmatprep.subr.mxu0 0.0
    %881 = vmatpush1.xpose.msra.mxu0 0.0
    %882 = vmatprep.subr.mxu0 0.0
    %883 = vmatpush1.xpose.msra.mxu0 0.0
    %884 = vmatprep.subr.mxu0 0.0
    %885 = vmatpush1.xpose.msra.mxu0 0.0
    %886 = vmatprep.subr.mxu0 0.0
    %887 = vmatpush1.xpose.msra.mxu0 0.0
    %888 = vmatprep.mubr.f32.mxu0 0.0
    %v889 = vand.u32 %v67, 4294901760
    %890 = vmatmul.mubr.f32.gmra.mrb[0].mxu0 %v889
    %v891 = vpop.f32.mrb[0].mxu0
    %v892 = vadd.f32 %v818, %v891
    %v893 = vpop.f32.mrb[0].mxu0
    %894 = vdwg.mxu0
    %895 = vmatprep.subr.mxu0 0.0
    %v896 = vand.u32 %v519, 4294901760
    %897 = vmatpush1.xpose.msra.mxu0 %v896
    %898 = vmatprep.subr.mxu0 0.0
    %899 = vmatpush1.xpose.msra.mxu0 0.0
    %900 = vmatprep.subr.mxu0 0.0
    %901 = vmatpush1.xpose.msra.mxu0 0.0
    %902 = vmatprep.subr.mxu0 0.0
    %903 = vmatpush1.xpose.msra.mxu0 0.0
    %904 = vmatprep.subr.mxu0 0.0
    %905 = vmatpush1.xpose.msra.mxu0 0.0
    %906 = vmatprep.subr.mxu0 0.0
    %907 = vmatpush1.xpose.msra.mxu0 0.0
    %908 = vmatprep.subr.mxu0 0.0
    %909 = vmatpush1.xpose.msra.mxu0 0.0
    %910 = vmatprep.subr.mxu0 0.0
    %911 = vmatpush1.xpose.msra.mxu0 0.0
    %912 = vmatprep.subr.mxu0 0.0
    %913 = vmatpush1.xpose.msra.mxu0 0.0
    %914 = vmatprep.subr.mxu0 0.0
    %915 = vmatpush1.xpose.msra.mxu0 0.0
    %916 = vmatprep.subr.mxu0 0.0
    %917 = vmatpush1.xpose.msra.mxu0 0.0
    %918 = vmatprep.subr.mxu0 0.0
    %919 = vmatpush1.xpose.msra.mxu0 0.0
    %920 = vmatprep.subr.mxu0 0.0
    %921 = vmatpush1.xpose.msra.mxu0 0.0
    %922 = vmatprep.subr.mxu0 0.0
    %923 = vmatpush1.xpose.msra.mxu0 0.0
    %924 = vmatprep.subr.mxu0 0.0
    %925 = vmatpush1.xpose.msra.mxu0 0.0
    %926 = vmatprep.subr.mxu0 0.0
    %927 = vmatpush1.xpose.msra.mxu0 0.0
    %928 = vmatprep.subr.mxu0 0.0
    %929 = vmatpush1.xpose.msra.mxu0 0.0
    %930 = vmatprep.subr.mxu0 0.0
    %931 = vmatpush1.xpose.msra.mxu0 0.0
    %932 = vmatprep.subr.mxu0 0.0
    %933 = vmatpush1.xpose.msra.mxu0 0.0
    %934 = vmatprep.subr.mxu0 0.0
    %935 = vmatpush1.xpose.msra.mxu0 0.0
    %936 = vmatprep.subr.mxu0 0.0
    %937 = vmatpush1.xpose.msra.mxu0 0.0
    %938 = vmatprep.subr.mxu0 0.0
    %939 = vmatpush1.xpose.msra.mxu0 0.0
    %940 = vmatprep.subr.mxu0 0.0
    %941 = vmatpush1.xpose.msra.mxu0 0.0
    %942 = vmatprep.subr.mxu0 0.0
    %943 = vmatpush1.xpose.msra.mxu0 0.0
    %944 = vmatprep.subr.mxu0 0.0
    %945 = vmatpush1.xpose.msra.mxu0 0.0
    %946 = vmatprep.subr.mxu0 0.0
    %947 = vmatpush1.xpose.msra.mxu0 0.0
    %948 = vmatprep.subr.mxu0 0.0
    %949 = vmatpush1.xpose.msra.mxu0 0.0
    %950 = vmatprep.subr.mxu0 0.0
    %951 = vmatpush1.xpose.msra.mxu0 0.0
    %952 = vmatprep.subr.mxu0 0.0
    %953 = vmatpush1.xpose.msra.mxu0 0.0
    %954 = vmatprep.subr.mxu0 0.0
    %955 = vmatpush1.xpose.msra.mxu0 0.0
    %956 = vmatprep.subr.mxu0 0.0
    %957 = vmatpush1.xpose.msra.mxu0 0.0
    %958 = vmatprep.subr.mxu0 0.0
    %959 = vmatpush1.xpose.msra.mxu0 0.0
    %960 = vmatprep.mubr.f32.mxu0 0.0
    %v961 = vand.u32 %v67, 4294901760
    %962 = vmatmul.mubr.f32.gmra.mrb[0].mxu0 %v961
    %v963 = vpop.f32.mrb[0].mxu0
    %v964 = vadd.f32 %v892, %v963
    %v965 = vpop.f32.mrb[0].mxu0
    %966 = vdwg.mxu0
    %v968 = vsel %vm65, %v62, 0
    %970 = vmatprep.subr.mxu0 0.0
    %v971 = vand.u32 %v70, 4294901760
    %972 = vmatpush1.xpose.msra.mxu0 %v971
    %973 = vmatprep.subr.mxu0 0.0
    %974 = vmatpush1.xpose.msra.mxu0 0.0
    %975 = vmatprep.subr.mxu0 0.0
    %976 = vmatpush1.xpose.msra.mxu0 0.0
    %977 = vmatprep.subr.mxu0 0.0
    %978 = vmatpush1.xpose.msra.mxu0 0.0
    %979 = vmatprep.subr.mxu0 0.0
    %980 = vmatpush1.xpose.msra.mxu0 0.0
    %981 = vmatprep.subr.mxu0 0.0
    %982 = vmatpush1.xpose.msra.mxu0 0.0
    %983 = vmatprep.subr.mxu0 0.0
    %984 = vmatpush1.xpose.msra.mxu0 0.0
    %985 = vmatprep.subr.mxu0 0.0
    %986 = vmatpush1.xpose.msra.mxu0 0.0
    %987 = vmatprep.subr.mxu0 0.0
    %988 = vmatpush1.xpose.msra.mxu0 0.0
    %989 = vmatprep.subr.mxu0 0.0
    %990 = vmatpush1.xpose.msra.mxu0 0.0
    %991 = vmatprep.subr.mxu0 0.0
    %992 = vmatpush1.xpose.msra.mxu0 0.0
    %993 = vmatprep.subr.mxu0 0.0
    %994 = vmatpush1.xpose.msra.mxu0 0.0
    %995 = vmatprep.subr.mxu0 0.0
    %996 = vmatpush1.xpose.msra.mxu0 0.0
    %997 = vmatprep.subr.mxu0 0.0
    %998 = vmatpush1.xpose.msra.mxu0 0.0
    %999 = vmatprep.subr.mxu0 0.0
    %1000 = vmatpush1.xpose.msra.mxu0 0.0
    %1001 = vmatprep.subr.mxu0 0.0
    %1002 = vmatpush1.xpose.msra.mxu0 0.0
    %1003 = vmatprep.subr.mxu0 0.0
    %1004 = vmatpush1.xpose.msra.mxu0 0.0
    %1005 = vmatprep.subr.mxu0 0.0
    %1006 = vmatpush1.xpose.msra.mxu0 0.0
    %1007 = vmatprep.subr.mxu0 0.0
    %1008 = vmatpush1.xpose.msra.mxu0 0.0
    %1009 = vmatprep.subr.mxu0 0.0
    %1010 = vmatpush1.xpose.msra.mxu0 0.0
    %1011 = vmatprep.subr.mxu0 0.0
    %1012 = vmatpush1.xpose.msra.mxu0 0.0
    %1013 = vmatprep.subr.mxu0 0.0
    %1014 = vmatpush1.xpose.msra.mxu0 0.0
    %1015 = vmatprep.subr.mxu0 0.0
    %1016 = vmatpush1.xpose.msra.mxu0 0.0
    %1017 = vmatprep.subr.mxu0 0.0
    %1018 = vmatpush1.xpose.msra.mxu0 0.0
    %1019 = vmatprep.subr.mxu0 0.0
    %1020 = vmatpush1.xpose.msra.mxu0 0.0
    %1021 = vmatprep.subr.mxu0 0.0
    %1022 = vmatpush1.xpose.msra.mxu0 0.0
    %1023 = vmatprep.subr.mxu0 0.0
    %1024 = vmatpush1.xpose.msra.mxu0 0.0
    %1025 = vmatprep.subr.mxu0 0.0
    %1026 = vmatpush1.xpose.msra.mxu0 0.0
    %1027 = vmatprep.subr.mxu0 0.0
    %1028 = vmatpush1.xpose.msra.mxu0 0.0
    %1029 = vmatprep.subr.mxu0 0.0
    %1030 = vmatpush1.xpose.msra.mxu0 0.0
    %1031 = vmatprep.subr.mxu0 0.0
    %1032 = vmatpush1.xpose.msra.mxu0 0.0
    %1033 = vmatprep.subr.mxu0 0.0
    %1034 = vmatpush1.xpose.msra.mxu0 0.0
    %1035 = vmatprep.mubr.f32.mxu0 0.0
    %v1036 = vand.u32 %v968, 4294901760
    %v1037 = vsub.f32 %v968, %v1036
    %v1038 = vand.u32 %v1037, 4294901760
    %v1039 = vsub.f32 %v1037, %v1038
    %v1040 = vand.u32 %v1039, 4294901760
    %1041 = vmatmul.mubr.f32.gmra.mrb[0].mxu0 %v1040
    %v1042 = vpop.f32.mrb[0].mxu0
    %v1043 = vadd.f32 0.0, %v1042
    %v1044 = vpop.f32.mrb[0].mxu0
    %1045 = vdwg.mxu0
    %1046 = vmatprep.subr.mxu0 0.0
    %v1047 = vand.u32 %v70, 4294901760
    %v1048 = vsub.f32 %v70, %v1047
    %v1049 = vand.u32 %v1048, 4294901760
    %v1050 = vsub.f32 %v1048, %v1049
    %v1051 = vand.u32 %v1050, 4294901760
    %1052 = vmatpush1.xpose.msra.mxu0 %v1051
    %1053 = vmatprep.subr.mxu0 0.0
    %1054 = vmatpush1.xpose.msra.mxu0 0.0
    %1055 = vmatprep.subr.mxu0 0.0
    %1056 = vmatpush1.xpose.msra.mxu0 0.0
    %1057 = vmatprep.subr.mxu0 0.0
    %1058 = vmatpush1.xpose.msra.mxu0 0.0
    %1059 = vmatprep.subr.mxu0 0.0
    %1060 = vmatpush1.xpose.msra.mxu0 0.0
    %1061 = vmatprep.subr.mxu0 0.0
    %1062 = vmatpush1.xpose.msra.mxu0 0.0
    %1063 = vmatprep.subr.mxu0 0.0
    %1064 = vmatpush1.xpose.msra.mxu0 0.0
    %1065 = vmatprep.subr.mxu0 0.0
    %1066 = vmatpush1.xpose.msra.mxu0 0.0
    %1067 = vmatprep.subr.mxu0 0.0
    %1068 = vmatpush1.xpose.msra.mxu0 0.0
    %1069 = vmatprep.subr.mxu0 0.0
    %1070 = vmatpush1.xpose.msra.mxu0 0.0
    %1071 = vmatprep.subr.mxu0 0.0
    %1072 = vmatpush1.xpose.msra.mxu0 0.0
    %1073 = vmatprep.subr.mxu0 0.0
    %1074 = vmatpush1.xpose.msra.mxu0 0.0
    %1075 = vmatprep.subr.mxu0 0.0
    %1076 = vmatpush1.xpose.msra.mxu0 0.0
    %1077 = vmatprep.subr.mxu0 0.0
    %1078 = vmatpush1.xpose.msra.mxu0 0.0
    %1079 = vmatprep.subr.mxu0 0.0
    %1080 = vmatpush1.xpose.msra.mxu0 0.0
    %1081 = vmatprep.subr.mxu0 0.0
    %1082 = vmatpush1.xpose.msra.mxu0 0.0
    %1083 = vmatprep.subr.mxu0 0.0
    %1084 = vmatpush1.xpose.msra.mxu0 0.0
    %1085 = vmatprep.subr.mxu0 0.0
    %1086 = vmatpush1.xpose.msra.mxu0 0.0
    %1087 = vmatprep.subr.mxu0 0.0
    %1088 = vmatpush1.xpose.msra.mxu0 0.0
    %1089 = vmatprep.subr.mxu0 0.0
    %1090 = vmatpush1.xpose.msra.mxu0 0.0
    %1091 = vmatprep.subr.mxu0 0.0
    %1092 = vmatpush1.xpose.msra.mxu0 0.0
    %1093 = vmatprep.subr.mxu0 0.0
    %1094 = vmatpush1.xpose.msra.mxu0 0.0
    %1095 = vmatprep.subr.mxu0 0.0
    %1096 = vmatpush1.xpose.msra.mxu0 0.0
    %1097 = vmatprep.subr.mxu0 0.0
    %1098 = vmatpush1.xpose.msra.mxu0 0.0
    %1099 = vmatprep.subr.mxu0 0.0
    %1100 = vmatpush1.xpose.msra.mxu0 0.0
    %1101 = vmatprep.subr.mxu0 0.0
    %1102 = vmatpush1.xpose.msra.mxu0 0.0
    %1103 = vmatprep.subr.mxu0 0.0
    %1104 = vmatpush1.xpose.msra.mxu0 0.0
    %1105 = vmatprep.subr.mxu0 0.0
    %1106 = vmatpush1.xpose.msra.mxu0 0.0
    %1107 = vmatprep.subr.mxu0 0.0
    %1108 = vmatpush1.xpose.msra.mxu0 0.0
    %1109 = vmatprep.subr.mxu0 0.0
    %1110 = vmatpush1.xpose.msra.mxu0 0.0
    %1111 = vmatprep.subr.mxu0 0.0
    %1112 = vmatpush1.xpose.msra.mxu0 0.0
    %1113 = vmatprep.subr.mxu0 0.0
    %1114 = vmatpush1.xpose.msra.mxu0 0.0
    %1115 = vmatprep.mubr.f32.mxu0 0.0
    %v1116 = vand.u32 %v968, 4294901760
    %1117 = vmatmul.mubr.f32.gmra.mrb[0].mxu0 %v1116
    %v1118 = vpop.f32.mrb[0].mxu0
    %v1119 = vadd.f32 %v1043, %v1118
    %v1120 = vpop.f32.mrb[0].mxu0
    %1121 = vdwg.mxu0
    %1122 = vmatprep.subr.mxu0 0.0
    %v1123 = vand.u32 %v70, 4294901760
    %v1124 = vsub.f32 %v70, %v1123
    %1125 = vmatpush1.xpose.msra.mxu0 %v1124
    %1126 = vmatprep.subr.mxu0 0.0
    %1127 = vmatpush1.xpose.msra.mxu0 0.0
    %1128 = vmatprep.subr.mxu0 0.0
    %1129 = vmatpush1.xpose.msra.mxu0 0.0
    %1130 = vmatprep.subr.mxu0 0.0
    %1131 = vmatpush1.xpose.msra.mxu0 0.0
    %1132 = vmatprep.subr.mxu0 0.0
    %1133 = vmatpush1.xpose.msra.mxu0 0.0
    %1134 = vmatprep.subr.mxu0 0.0
    %1135 = vmatpush1.xpose.msra.mxu0 0.0
    %1136 = vmatprep.subr.mxu0 0.0
    %1137 = vmatpush1.xpose.msra.mxu0 0.0
    %1138 = vmatprep.subr.mxu0 0.0
    %1139 = vmatpush1.xpose.msra.mxu0 0.0
    %1140 = vmatprep.subr.mxu0 0.0
    %1141 = vmatpush1.xpose.msra.mxu0 0.0
    %1142 = vmatprep.subr.mxu0 0.0
    %1143 = vmatpush1.xpose.msra.mxu0 0.0
    %1144 = vmatprep.subr.mxu0 0.0
    %1145 = vmatpush1.xpose.msra.mxu0 0.0
    %1146 = vmatprep.subr.mxu0 0.0
    %1147 = vmatpush1.xpose.msra.mxu0 0.0
    %1148 = vmatprep.subr.mxu0 0.0
    %1149 = vmatpush1.xpose.msra.mxu0 0.0
    %1150 = vmatprep.subr.mxu0 0.0
    %1151 = vmatpush1.xpose.msra.mxu0 0.0
    %1152 = vmatprep.subr.mxu0 0.0
    %1153 = vmatpush1.xpose.msra.mxu0 0.0
    %1154 = vmatprep.subr.mxu0 0.0
    %1155 = vmatpush1.xpose.msra.mxu0 0.0
    %1156 = vmatprep.subr.mxu0 0.0
    %1157 = vmatpush1.xpose.msra.mxu0 0.0
    %1158 = vmatprep.subr.mxu0 0.0
    %1159 = vmatpush1.xpose.msra.mxu0 0.0
    %1160 = vmatprep.subr.mxu0 0.0
    %1161 = vmatpush1.xpose.msra.mxu0 0.0
    %1162 = vmatprep.subr.mxu0 0.0
    %1163 = vmatpush1.xpose.msra.mxu0 0.0
    %1164 = vmatprep.subr.mxu0 0.0
    %1165 = vmatpush1.xpose.msra.mxu0 0.0
    %1166 = vmatprep.subr.mxu0 0.0
    %1167 = vmatpush1.xpose.msra.mxu0 0.0
    %1168 = vmatprep.subr.mxu0 0.0
    %1169 = vmatpush1.xpose.msra.mxu0 0.0
    %1170 = vmatprep.subr.mxu0 0.0
    %1171 = vmatpush1.xpose.msra.mxu0 0.0
    %1172 = vmatprep.subr.mxu0 0.0
    %1173 = vmatpush1.xpose.msra.mxu0 0.0
    %1174 = vmatprep.subr.mxu0 0.0
    %1175 = vmatpush1.xpose.msra.mxu0 0.0
    %1176 = vmatprep.subr.mxu0 0.0
    %1177 = vmatpush1.xpose.msra.mxu0 0.0
    %1178 = vmatprep.subr.mxu0 0.0
    %1179 = vmatpush1.xpose.msra.mxu0 0.0
    %1180 = vmatprep.subr.mxu0 0.0
    %1181 = vmatpush1.xpose.msra.mxu0 0.0
    %1182 = vmatprep.subr.mxu0 0.0
    %1183 = vmatpush1.xpose.msra.mxu0 0.0
    %1184 = vmatprep.subr.mxu0 0.0
    %1185 = vmatpush1.xpose.msra.mxu0 0.0
    %1186 = vmatprep.subr.mxu0 0.0
    %1187 = vmatpush1.xpose.msra.mxu0 0.0
    %1188 = vmatprep.mubr.f32.mxu0 0.0
    %v1189 = vand.u32 %v968, 4294901760
    %v1190 = vsub.f32 %v968, %v1189
    %1191 = vmatmul.mubr.f32.gmra.mrb[0].mxu0 %v1190
    %v1192 = vpop.f32.mrb[0].mxu0
    %v1193 = vadd.f32 %v1119, %v1192
    %v1194 = vpop.f32.mrb[0].mxu0
    %1195 = vdwg.mxu0
    %1196 = vmatprep.subr.mxu0 0.0
    %v1197 = vand.u32 %v70, 4294901760
    %1198 = vmatpush1.xpose.msra.mxu0 %v1197
    %1199 = vmatprep.subr.mxu0 0.0
    %1200 = vmatpush1.xpose.msra.mxu0 0.0
    %1201 = vmatprep.subr.mxu0 0.0
    %1202 = vmatpush1.xpose.msra.mxu0 0.0
    %1203 = vmatprep.subr.mxu0 0.0
    %1204 = vmatpush1.xpose.msra.mxu0 0.0
    %1205 = vmatprep.subr.mxu0 0.0
    %1206 = vmatpush1.xpose.msra.mxu0 0.0
    %1207 = vmatprep.subr.mxu0 0.0
    %1208 = vmatpush1.xpose.msra.mxu0 0.0
    %1209 = vmatprep.subr.mxu0 0.0
    %1210 = vmatpush1.xpose.msra.mxu0 0.0
    %1211 = vmatprep.subr.mxu0 0.0
    %1212 = vmatpush1.xpose.msra.mxu0 0.0
    %1213 = vmatprep.subr.mxu0 0.0
    %1214 = vmatpush1.xpose.msra.mxu0 0.0
    %1215 = vmatprep.subr.mxu0 0.0
    %1216 = vmatpush1.xpose.msra.mxu0 0.0
    %1217 = vmatprep.subr.mxu0 0.0
    %1218 = vmatpush1.xpose.msra.mxu0 0.0
    %1219 = vmatprep.subr.mxu0 0.0
    %1220 = vmatpush1.xpose.msra.mxu0 0.0
    %1221 = vmatprep.subr.mxu0 0.0
    %1222 = vmatpush1.xpose.msra.mxu0 0.0
    %1223 = vmatprep.subr.mxu0 0.0
    %1224 = vmatpush1.xpose.msra.mxu0 0.0
    %1225 = vmatprep.subr.mxu0 0.0
    %1226 = vmatpush1.xpose.msra.mxu0 0.0
    %1227 = vmatprep.subr.mxu0 0.0
    %1228 = vmatpush1.xpose.msra.mxu0 0.0
    %1229 = vmatprep.subr.mxu0 0.0
    %1230 = vmatpush1.xpose.msra.mxu0 0.0
    %1231 = vmatprep.subr.mxu0 0.0
    %1232 = vmatpush1.xpose.msra.mxu0 0.0
    %1233 = vmatprep.subr.mxu0 0.0
    %1234 = vmatpush1.xpose.msra.mxu0 0.0
    %1235 = vmatprep.subr.mxu0 0.0
    %1236 = vmatpush1.xpose.msra.mxu0 0.0
    %1237 = vmatprep.subr.mxu0 0.0
    %1238 = vmatpush1.xpose.msra.mxu0 0.0
    %1239 = vmatprep.subr.mxu0 0.0
    %1240 = vmatpush1.xpose.msra.mxu0 0.0
    %1241 = vmatprep.subr.mxu0 0.0
    %1242 = vmatpush1.xpose.msra.mxu0 0.0
    %1243 = vmatprep.subr.mxu0 0.0
    %1244 = vmatpush1.xpose.msra.mxu0 0.0
    %1245 = vmatprep.subr.mxu0 0.0
    %1246 = vmatpush1.xpose.msra.mxu0 0.0
    %1247 = vmatprep.subr.mxu0 0.0
    %1248 = vmatpush1.xpose.msra.mxu0 0.0
    %1249 = vmatprep.subr.mxu0 0.0
    %1250 = vmatpush1.xpose.msra.mxu0 0.0
    %1251 = vmatprep.subr.mxu0 0.0
    %1252 = vmatpush1.xpose.msra.mxu0 0.0
    %1253 = vmatprep.subr.mxu0 0.0
    %1254 = vmatpush1.xpose.msra.mxu0 0.0
    %1255 = vmatprep.subr.mxu0 0.0
    %1256 = vmatpush1.xpose.msra.mxu0 0.0
    %1257 = vmatprep.subr.mxu0 0.0
    %1258 = vmatpush1.xpose.msra.mxu0 0.0
    %1259 = vmatprep.subr.mxu0 0.0
    %1260 = vmatpush1.xpose.msra.mxu0 0.0
    %1261 = vmatprep.mubr.f32.mxu0 0.0
    %v1262 = vand.u32 %v968, 4294901760
    %v1263 = vsub.f32 %v968, %v1262
    %v1264 = vand.u32 %v1263, 4294901760
    %1265 = vmatmul.mubr.f32.gmra.mrb[0].mxu0 %v1264
    %v1266 = vpop.f32.mrb[0].mxu0
    %v1267 = vadd.f32 %v1193, %v1266
    %v1268 = vpop.f32.mrb[0].mxu0
    %1269 = vdwg.mxu0
    %1270 = vmatprep.subr.mxu0 0.0
    %v1271 = vand.u32 %v70, 4294901760
    %v1272 = vsub.f32 %v70, %v1271
    %v1273 = vand.u32 %v1272, 4294901760
    %1274 = vmatpush1.xpose.msra.mxu0 %v1273
    %1275 = vmatprep.subr.mxu0 0.0
    %1276 = vmatpush1.xpose.msra.mxu0 0.0
    %1277 = vmatprep.subr.mxu0 0.0
    %1278 = vmatpush1.xpose.msra.mxu0 0.0
    %1279 = vmatprep.subr.mxu0 0.0
    %1280 = vmatpush1.xpose.msra.mxu0 0.0
    %1281 = vmatprep.subr.mxu0 0.0
    %1282 = vmatpush1.xpose.msra.mxu0 0.0
    %1283 = vmatprep.subr.mxu0 0.0
    %1284 = vmatpush1.xpose.msra.mxu0 0.0
    %1285 = vmatprep.subr.mxu0 0.0
    %1286 = vmatpush1.xpose.msra.mxu0 0.0
    %1287 = vmatprep.subr.mxu0 0.0
    %1288 = vmatpush1.xpose.msra.mxu0 0.0
    %1289 = vmatprep.subr.mxu0 0.0
    %1290 = vmatpush1.xpose.msra.mxu0 0.0
    %1291 = vmatprep.subr.mxu0 0.0
    %1292 = vmatpush1.xpose.msra.mxu0 0.0
    %1293 = vmatprep.subr.mxu0 0.0
    %1294 = vmatpush1.xpose.msra.mxu0 0.0
    %1295 = vmatprep.subr.mxu0 0.0
    %1296 = vmatpush1.xpose.msra.mxu0 0.0
    %1297 = vmatprep.subr.mxu0 0.0
    %1298 = vmatpush1.xpose.msra.mxu0 0.0
    %1299 = vmatprep.subr.mxu0 0.0
    %1300 = vmatpush1.xpose.msra.mxu0 0.0
    %1301 = vmatprep.subr.mxu0 0.0
    %1302 = vmatpush1.xpose.msra.mxu0 0.0
    %1303 = vmatprep.subr.mxu0 0.0
    %1304 = vmatpush1.xpose.msra.mxu0 0.0
    %1305 = vmatprep.subr.mxu0 0.0
    %1306 = vmatpush1.xpose.msra.mxu0 0.0
    %1307 = vmatprep.subr.mxu0 0.0
    %1308 = vmatpush1.xpose.msra.mxu0 0.0
    %1309 = vmatprep.subr.mxu0 0.0
    %1310 = vmatpush1.xpose.msra.mxu0 0.0
    %1311 = vmatprep.subr.mxu0 0.0
    %1312 = vmatpush1.xpose.msra.mxu0 0.0
    %1313 = vmatprep.subr.mxu0 0.0
    %1314 = vmatpush1.xpose.msra.mxu0 0.0
    %1315 = vmatprep.subr.mxu0 0.0
    %1316 = vmatpush1.xpose.msra.mxu0 0.0
    %1317 = vmatprep.subr.mxu0 0.0
    %1318 = vmatpush1.xpose.msra.mxu0 0.0
    %1319 = vmatprep.subr.mxu0 0.0
    %1320 = vmatpush1.xpose.msra.mxu0 0.0
    %1321 = vmatprep.subr.mxu0 0.0
    %1322 = vmatpush1.xpose.msra.mxu0 0.0
    %1323 = vmatprep.subr.mxu0 0.0
    %1324 = vmatpush1.xpose.msra.mxu0 0.0
    %1325 = vmatprep.subr.mxu0 0.0
    %1326 = vmatpush1.xpose.msra.mxu0 0.0
    %1327 = vmatprep.subr.mxu0 0.0
    %1328 = vmatpush1.xpose.msra.mxu0 0.0
    %1329 = vmatprep.subr.mxu0 0.0
    %1330 = vmatpush1.xpose.msra.mxu0 0.0
    %1331 = vmatprep.subr.mxu0 0.0
    %1332 = vmatpush1.xpose.msra.mxu0 0.0
    %1333 = vmatprep.subr.mxu0 0.0
    %1334 = vmatpush1.xpose.msra.mxu0 0.0
    %1335 = vmatprep.subr.mxu0 0.0
    %1336 = vmatpush1.xpose.msra.mxu0 0.0
    %1337 = vmatprep.mubr.f32.mxu0 0.0
    %v1338 = vand.u32 %v968, 4294901760
    %1339 = vmatmul.mubr.f32.gmra.mrb[0].mxu0 %v1338
    %v1340 = vpop.f32.mrb[0].mxu0
    %v1341 = vadd.f32 %v1267, %v1340
    %v1342 = vpop.f32.mrb[0].mxu0
    %1343 = vdwg.mxu0
    %1344 = vmatprep.subr.mxu0 0.0
    %v1345 = vand.u32 %v70, 4294901760
    %1346 = vmatpush1.xpose.msra.mxu0 %v1345
    %1347 = vmatprep.subr.mxu0 0.0
    %1348 = vmatpush1.xpose.msra.mxu0 0.0
    %1349 = vmatprep.subr.mxu0 0.0
    %1350 = vmatpush1.xpose.msra.mxu0 0.0
    %1351 = vmatprep.subr.mxu0 0.0
    %1352 = vmatpush1.xpose.msra.mxu0 0.0
    %1353 = vmatprep.subr.mxu0 0.0
    %1354 = vmatpush1.xpose.msra.mxu0 0.0
    %1355 = vmatprep.subr.mxu0 0.0
    %1356 = vmatpush1.xpose.msra.mxu0 0.0
    %1357 = vmatprep.subr.mxu0 0.0
    %1358 = vmatpush1.xpose.msra.mxu0 0.0
    %1359 = vmatprep.subr.mxu0 0.0
    %1360 = vmatpush1.xpose.msra.mxu0 0.0
    %1361 = vmatprep.subr.mxu0 0.0
    %1362 = vmatpush1.xpose.msra.mxu0 0.0
    %1363 = vmatprep.subr.mxu0 0.0
    %1364 = vmatpush1.xpose.msra.mxu0 0.0
    %1365 = vmatprep.subr.mxu0 0.0
    %1366 = vmatpush1.xpose.msra.mxu0 0.0
    %1367 = vmatprep.subr.mxu0 0.0
    %1368 = vmatpush1.xpose.msra.mxu0 0.0
    %1369 = vmatprep.subr.mxu0 0.0
    %1370 = vmatpush1.xpose.msra.mxu0 0.0
    %1371 = vmatprep.subr.mxu0 0.0
    %1372 = vmatpush1.xpose.msra.mxu0 0.0
    %1373 = vmatprep.subr.mxu0 0.0
    %1374 = vmatpush1.xpose.msra.mxu0 0.0
    %1375 = vmatprep.subr.mxu0 0.0
    %1376 = vmatpush1.xpose.msra.mxu0 0.0
    %1377 = vmatprep.subr.mxu0 0.0
    %1378 = vmatpush1.xpose.msra.mxu0 0.0
    %1379 = vmatprep.subr.mxu0 0.0
    %1380 = vmatpush1.xpose.msra.mxu0 0.0
    %1381 = vmatprep.subr.mxu0 0.0
    %1382 = vmatpush1.xpose.msra.mxu0 0.0
    %1383 = vmatprep.subr.mxu0 0.0
    %1384 = vmatpush1.xpose.msra.mxu0 0.0
    %1385 = vmatprep.subr.mxu0 0.0
    %1386 = vmatpush1.xpose.msra.mxu0 0.0
    %1387 = vmatprep.subr.mxu0 0.0
    %1388 = vmatpush1.xpose.msra.mxu0 0.0
    %1389 = vmatprep.subr.mxu0 0.0
    %1390 = vmatpush1.xpose.msra.mxu0 0.0
    %1391 = vmatprep.subr.mxu0 0.0
    %1392 = vmatpush1.xpose.msra.mxu0 0.0
    %1393 = vmatprep.subr.mxu0 0.0
    %1394 = vmatpush1.xpose.msra.mxu0 0.0
    %1395 = vmatprep.subr.mxu0 0.0
    %1396 = vmatpush1.xpose.msra.mxu0 0.0
    %1397 = vmatprep.subr.mxu0 0.0
    %1398 = vmatpush1.xpose.msra.mxu0 0.0
    %1399 = vmatprep.subr.mxu0 0.0
    %1400 = vmatpush1.xpose.msra.mxu0 0.0
    %1401 = vmatprep.subr.mxu0 0.0
    %1402 = vmatpush1.xpose.msra.mxu0 0.0
    %1403 = vmatprep.subr.mxu0 0.0
    %1404 = vmatpush1.xpose.msra.mxu0 0.0
    %1405 = vmatprep.subr.mxu0 0.0
    %1406 = vmatpush1.xpose.msra.mxu0 0.0
    %1407 = vmatprep.subr.mxu0 0.0
    %1408 = vmatpush1.xpose.msra.mxu0 0.0
    %1409 = vmatprep.mubr.f32.mxu0 0.0
    %v1410 = vand.u32 %v968, 4294901760
    %1411 = vmatmul.mubr.f32.gmra.mrb[0].mxu0 %v1410
    %v1412 = vpop.f32.mrb[0].mxu0
    %v1413 = vadd.f32 %v1341, %v1412
    %v1414 = vpop.f32.mrb[0].mxu0
    %1415 = vdwg.mxu0
    %1416 = vmatprep.subr.mxu0 0.0
    %v1417 = vand.u32 %v519, 4294901760
    %1418 = vmatpush1.xpose.msra.mxu0 %v1417
    %1419 = vmatprep.subr.mxu0 0.0
    %1420 = vmatpush1.xpose.msra.mxu0 0.0
    %1421 = vmatprep.subr.mxu0 0.0
    %1422 = vmatpush1.xpose.msra.mxu0 0.0
    %1423 = vmatprep.subr.mxu0 0.0
    %1424 = vmatpush1.xpose.msra.mxu0 0.0
    %1425 = vmatprep.subr.mxu0 0.0
    %1426 = vmatpush1.xpose.msra.mxu0 0.0
    %1427 = vmatprep.subr.mxu0 0.0
    %1428 = vmatpush1.xpose.msra.mxu0 0.0
    %1429 = vmatprep.subr.mxu0 0.0
    %1430 = vmatpush1.xpose.msra.mxu0 0.0
    %1431 = vmatprep.subr.mxu0 0.0
    %1432 = vmatpush1.xpose.msra.mxu0 0.0
    %1433 = vmatprep.subr.mxu0 0.0
    %1434 = vmatpush1.xpose.msra.mxu0 0.0
    %1435 = vmatprep.subr.mxu0 0.0
    %1436 = vmatpush1.xpose.msra.mxu0 0.0
    %1437 = vmatprep.subr.mxu0 0.0
    %1438 = vmatpush1.xpose.msra.mxu0 0.0
    %1439 = vmatprep.subr.mxu0 0.0
    %1440 = vmatpush1.xpose.msra.mxu0 0.0
    %1441 = vmatprep.subr.mxu0 0.0
    %1442 = vmatpush1.xpose.msra.mxu0 0.0
    %1443 = vmatprep.subr.mxu0 0.0
    %1444 = vmatpush1.xpose.msra.mxu0 0.0
    %1445 = vmatprep.subr.mxu0 0.0
    %1446 = vmatpush1.xpose.msra.mxu0 0.0
    %1447 = vmatprep.subr.mxu0 0.0
    %1448 = vmatpush1.xpose.msra.mxu0 0.0
    %1449 = vmatprep.subr.mxu0 0.0
    %1450 = vmatpush1.xpose.msra.mxu0 0.0
    %1451 = vmatprep.subr.mxu0 0.0
    %1452 = vmatpush1.xpose.msra.mxu0 0.0
    %1453 = vmatprep.subr.mxu0 0.0
    %1454 = vmatpush1.xpose.msra.mxu0 0.0
    %1455 = vmatprep.subr.mxu0 0.0
    %1456 = vmatpush1.xpose.msra.mxu0 0.0
    %1457 = vmatprep.subr.mxu0 0.0
    %1458 = vmatpush1.xpose.msra.mxu0 0.0
    %1459 = vmatprep.subr.mxu0 0.0
    %1460 = vmatpush1.xpose.msra.mxu0 0.0
    %1461 = vmatprep.subr.mxu0 0.0
    %1462 = vmatpush1.xpose.msra.mxu0 0.0
    %1463 = vmatprep.subr.mxu0 0.0
    %1464 = vmatpush1.xpose.msra.mxu0 0.0
    %1465 = vmatprep.subr.mxu0 0.0
    %1466 = vmatpush1.xpose.msra.mxu0 0.0
    %1467 = vmatprep.subr.mxu0 0.0
    %1468 = vmatpush1.xpose.msra.mxu0 0.0
    %1469 = vmatprep.subr.mxu0 0.0
    %1470 = vmatpush1.xpose.msra.mxu0 0.0
    %1471 = vmatprep.subr.mxu0 0.0
    %1472 = vmatpush1.xpose.msra.mxu0 0.0
    %1473 = vmatprep.subr.mxu0 0.0
    %1474 = vmatpush1.xpose.msra.mxu0 0.0
    %1475 = vmatprep.subr.mxu0 0.0
    %1476 = vmatpush1.xpose.msra.mxu0 0.0
    %1477 = vmatprep.subr.mxu0 0.0
    %1478 = vmatpush1.xpose.msra.mxu0 0.0
    %1479 = vmatprep.subr.mxu0 0.0
    %1480 = vmatpush1.xpose.msra.mxu0 0.0
    %1481 = vmatprep.mubr.f32.mxu0 0.0
    %v1482 = vand.u32 %v968, 4294901760
    %v1483 = vsub.f32 %v968, %v1482
    %v1484 = vand.u32 %v1483, 4294901760
    %v1485 = vsub.f32 %v1483, %v1484
    %v1486 = vand.u32 %v1485, 4294901760
    %1487 = vmatmul.mubr.f32.gmra.mrb[0].mxu0 %v1486
    %v1488 = vpop.f32.mrb[0].mxu0
    %v1489 = vadd.f32 0.0, %v1488
    %v1490 = vpop.f32.mrb[0].mxu0
    %1491 = vdwg.mxu0
    %1492 = vmatprep.subr.mxu0 0.0
    %v1493 = vand.u32 %v519, 4294901760
    %v1494 = vsub.f32 %v519, %v1493
    %v1495 = vand.u32 %v1494, 4294901760
    %v1496 = vsub.f32 %v1494, %v1495
    %v1497 = vand.u32 %v1496, 4294901760
    %1498 = vmatpush1.xpose.msra.mxu0 %v1497
    %1499 = vmatprep.subr.mxu0 0.0
    %1500 = vmatpush1.xpose.msra.mxu0 0.0
    %1501 = vmatprep.subr.mxu0 0.0
    %1502 = vmatpush1.xpose.msra.mxu0 0.0
    %1503 = vmatprep.subr.mxu0 0.0
    %1504 = vmatpush1.xpose.msra.mxu0 0.0
    %1505 = vmatprep.subr.mxu0 0.0
    %1506 = vmatpush1.xpose.msra.mxu0 0.0
    %1507 = vmatprep.subr.mxu0 0.0
    %1508 = vmatpush1.xpose.msra.mxu0 0.0
    %1509 = vmatprep.subr.mxu0 0.0
    %1510 = vmatpush1.xpose.msra.mxu0 0.0
    %1511 = vmatprep.subr.mxu0 0.0
    %1512 = vmatpush1.xpose.msra.mxu0 0.0
    %1513 = vmatprep.subr.mxu0 0.0
    %1514 = vmatpush1.xpose.msra.mxu0 0.0
    %1515 = vmatprep.subr.mxu0 0.0
    %1516 = vmatpush1.xpose.msra.mxu0 0.0
    %1517 = vmatprep.subr.mxu0 0.0
    %1518 = vmatpush1.xpose.msra.mxu0 0.0
    %1519 = vmatprep.subr.mxu0 0.0
    %1520 = vmatpush1.xpose.msra.mxu0 0.0
    %1521 = vmatprep.subr.mxu0 0.0
    %1522 = vmatpush1.xpose.msra.mxu0 0.0
    %1523 = vmatprep.subr.mxu0 0.0
    %1524 = vmatpush1.xpose.msra.mxu0 0.0
    %1525 = vmatprep.subr.mxu0 0.0
    %1526 = vmatpush1.xpose.msra.mxu0 0.0
    %1527 = vmatprep.subr.mxu0 0.0
    %1528 = vmatpush1.xpose.msra.mxu0 0.0
    %1529 = vmatprep.subr.mxu0 0.0
    %1530 = vmatpush1.xpose.msra.mxu0 0.0
    %1531 = vmatprep.subr.mxu0 0.0
    %1532 = vmatpush1.xpose.msra.mxu0 0.0
    %1533 = vmatprep.subr.mxu0 0.0
    %1534 = vmatpush1.xpose.msra.mxu0 0.0
    %1535 = vmatprep.subr.mxu0 0.0
    %1536 = vmatpush1.xpose.msra.mxu0 0.0
    %1537 = vmatprep.subr.mxu0 0.0
    %1538 = vmatpush1.xpose.msra.mxu0 0.0
    %1539 = vmatprep.subr.mxu0 0.0
    %1540 = vmatpush1.xpose.msra.mxu0 0.0
    %1541 = vmatprep.subr.mxu0 0.0
    %1542 = vmatpush1.xpose.msra.mxu0 0.0
    %1543 = vmatprep.subr.mxu0 0.0
    %1544 = vmatpush1.xpose.msra.mxu0 0.0
    %1545 = vmatprep.subr.mxu0 0.0
    %1546 = vmatpush1.xpose.msra.mxu0 0.0
    %1547 = vmatprep.subr.mxu0 0.0
    %1548 = vmatpush1.xpose.msra.mxu0 0.0
    %1549 = vmatprep.subr.mxu0 0.0
    %1550 = vmatpush1.xpose.msra.mxu0 0.0
    %1551 = vmatprep.subr.mxu0 0.0
    %1552 = vmatpush1.xpose.msra.mxu0 0.0
    %1553 = vmatprep.subr.mxu0 0.0
    %1554 = vmatpush1.xpose.msra.mxu0 0.0
    %1555 = vmatprep.subr.mxu0 0.0
    %1556 = vmatpush1.xpose.msra.mxu0 0.0
    %1557 = vmatprep.subr.mxu0 0.0
    %1558 = vmatpush1.xpose.msra.mxu0 0.0
    %1559 = vmatprep.subr.mxu0 0.0
    %1560 = vmatpush1.xpose.msra.mxu0 0.0
    %1561 = vmatprep.mubr.f32.mxu0 0.0
    %v1562 = vand.u32 %v968, 4294901760
    %1563 = vmatmul.mubr.f32.gmra.mrb[0].mxu0 %v1562
    %v1564 = vpop.f32.mrb[0].mxu0
    %v1565 = vadd.f32 %v1489, %v1564
    %v1566 = vpop.f32.mrb[0].mxu0
    %1567 = vdwg.mxu0
    %1568 = vmatprep.subr.mxu0 0.0
    %v1569 = vand.u32 %v519, 4294901760
    %v1570 = vsub.f32 %v519, %v1569
    %1571 = vmatpush1.xpose.msra.mxu0 %v1570
    %1572 = vmatprep.subr.mxu0 0.0
    %1573 = vmatpush1.xpose.msra.mxu0 0.0
    %1574 = vmatprep.subr.mxu0 0.0
    %1575 = vmatpush1.xpose.msra.mxu0 0.0
    %1576 = vmatprep.subr.mxu0 0.0
    %1577 = vmatpush1.xpose.msra.mxu0 0.0
    %1578 = vmatprep.subr.mxu0 0.0
    %1579 = vmatpush1.xpose.msra.mxu0 0.0
    %1580 = vmatprep.subr.mxu0 0.0
    %1581 = vmatpush1.xpose.msra.mxu0 0.0
    %1582 = vmatprep.subr.mxu0 0.0
    %1583 = vmatpush1.xpose.msra.mxu0 0.0
    %1584 = vmatprep.subr.mxu0 0.0
    %1585 = vmatpush1.xpose.msra.mxu0 0.0
    %1586 = vmatprep.subr.mxu0 0.0
    %1587 = vmatpush1.xpose.msra.mxu0 0.0
    %1588 = vmatprep.subr.mxu0 0.0
    %1589 = vmatpush1.xpose.msra.mxu0 0.0
    %1590 = vmatprep.subr.mxu0 0.0
    %1591 = vmatpush1.xpose.msra.mxu0 0.0
    %1592 = vmatprep.subr.mxu0 0.0
    %1593 = vmatpush1.xpose.msra.mxu0 0.0
    %1594 = vmatprep.subr.mxu0 0.0
    %1595 = vmatpush1.xpose.msra.mxu0 0.0
    %1596 = vmatprep.subr.mxu0 0.0
    %1597 = vmatpush1.xpose.msra.mxu0 0.0
    %1598 = vmatprep.subr.mxu0 0.0
    %1599 = vmatpush1.xpose.msra.mxu0 0.0
    %1600 = vmatprep.subr.mxu0 0.0
    %1601 = vmatpush1.xpose.msra.mxu0 0.0
    %1602 = vmatprep.subr.mxu0 0.0
    %1603 = vmatpush1.xpose.msra.mxu0 0.0
    %1604 = vmatprep.subr.mxu0 0.0
    %1605 = vmatpush1.xpose.msra.mxu0 0.0
    %1606 = vmatprep.subr.mxu0 0.0
    %1607 = vmatpush1.xpose.msra.mxu0 0.0
    %1608 = vmatprep.subr.mxu0 0.0
    %1609 = vmatpush1.xpose.msra.mxu0 0.0
    %1610 = vmatprep.subr.mxu0 0.0
    %1611 = vmatpush1.xpose.msra.mxu0 0.0
    %1612 = vmatprep.subr.mxu0 0.0
    %1613 = vmatpush1.xpose.msra.mxu0 0.0
    %1614 = vmatprep.subr.mxu0 0.0
    %1615 = vmatpush1.xpose.msra.mxu0 0.0
    %1616 = vmatprep.subr.mxu0 0.0
    %1617 = vmatpush1.xpose.msra.mxu0 0.0
    %1618 = vmatprep.subr.mxu0 0.0
    %1619 = vmatpush1.xpose.msra.mxu0 0.0
    %1620 = vmatprep.subr.mxu0 0.0
    %1621 = vmatpush1.xpose.msra.mxu0 0.0
    %1622 = vmatprep.subr.mxu0 0.0
    %1623 = vmatpush1.xpose.msra.mxu0 0.0
    %1624 = vmatprep.subr.mxu0 0.0
    %1625 = vmatpush1.xpose.msra.mxu0 0.0
    %1626 = vmatprep.subr.mxu0 0.0
    %1627 = vmatpush1.xpose.msra.mxu0 0.0
    %1628 = vmatprep.subr.mxu0 0.0
    %1629 = vmatpush1.xpose.msra.mxu0 0.0
    %1630 = vmatprep.subr.mxu0 0.0
    %1631 = vmatpush1.xpose.msra.mxu0 0.0
    %1632 = vmatprep.subr.mxu0 0.0
    %1633 = vmatpush1.xpose.msra.mxu0 0.0
    %1634 = vmatprep.mubr.f32.mxu0 0.0
    %v1635 = vand.u32 %v968, 4294901760
    %v1636 = vsub.f32 %v968, %v1635
    %1637 = vmatmul.mubr.f32.gmra.mrb[0].mxu0 %v1636
    %v1638 = vpop.f32.mrb[0].mxu0
    %v1639 = vadd.f32 %v1565, %v1638
    %v1640 = vpop.f32.mrb[0].mxu0
    %1641 = vdwg.mxu0
    %1642 = vmatprep.subr.mxu0 0.0
    %v1643 = vand.u32 %v519, 4294901760
    %1644 = vmatpush1.xpose.msra.mxu0 %v1643
    %1645 = vmatprep.subr.mxu0 0.0
    %1646 = vmatpush1.xpose.msra.mxu0 0.0
    %1647 = vmatprep.subr.mxu0 0.0
    %1648 = vmatpush1.xpose.msra.mxu0 0.0
    %1649 = vmatprep.subr.mxu0 0.0
    %1650 = vmatpush1.xpose.msra.mxu0 0.0
    %1651 = vmatprep.subr.mxu0 0.0
    %1652 = vmatpush1.xpose.msra.mxu0 0.0
    %1653 = vmatprep.subr.mxu0 0.0
    %1654 = vmatpush1.xpose.msra.mxu0 0.0
    %1655 = vmatprep.subr.mxu0 0.0
    %1656 = vmatpush1.xpose.msra.mxu0 0.0
    %1657 = vmatprep.subr.mxu0 0.0
    %1658 = vmatpush1.xpose.msra.mxu0 0.0
    %1659 = vmatprep.subr.mxu0 0.0
    %1660 = vmatpush1.xpose.msra.mxu0 0.0
    %1661 = vmatprep.subr.mxu0 0.0
    %1662 = vmatpush1.xpose.msra.mxu0 0.0
    %1663 = vmatprep.subr.mxu0 0.0
    %1664 = vmatpush1.xpose.msra.mxu0 0.0
    %1665 = vmatprep.subr.mxu0 0.0
    %1666 = vmatpush1.xpose.msra.mxu0 0.0
    %1667 = vmatprep.subr.mxu0 0.0
    %1668 = vmatpush1.xpose.msra.mxu0 0.0
    %1669 = vmatprep.subr.mxu0 0.0
    %1670 = vmatpush1.xpose.msra.mxu0 0.0
    %1671 = vmatprep.subr.mxu0 0.0
    %1672 = vmatpush1.xpose.msra.mxu0 0.0
    %1673 = vmatprep.subr.mxu0 0.0
    %1674 = vmatpush1.xpose.msra.mxu0 0.0
    %1675 = vmatprep.subr.mxu0 0.0
    %1676 = vmatpush1.xpose.msra.mxu0 0.0
    %1677 = vmatprep.subr.mxu0 0.0
    %1678 = vmatpush1.xpose.msra.mxu0 0.0
    %1679 = vmatprep.subr.mxu0 0.0
    %1680 = vmatpush1.xpose.msra.mxu0 0.0
    %1681 = vmatprep.subr.mxu0 0.0
    %1682 = vmatpush1.xpose.msra.mxu0 0.0
    %1683 = vmatprep.subr.mxu0 0.0
    %1684 = vmatpush1.xpose.msra.mxu0 0.0
    %1685 = vmatprep.subr.mxu0 0.0
    %1686 = vmatpush1.xpose.msra.mxu0 0.0
    %1687 = vmatprep.subr.mxu0 0.0
    %1688 = vmatpush1.xpose.msra.mxu0 0.0
    %1689 = vmatprep.subr.mxu0 0.0
    %1690 = vmatpush1.xpose.msra.mxu0 0.0
    %1691 = vmatprep.subr.mxu0 0.0
    %1692 = vmatpush1.xpose.msra.mxu0 0.0
    %1693 = vmatprep.subr.mxu0 0.0
    %1694 = vmatpush1.xpose.msra.mxu0 0.0
    %1695 = vmatprep.subr.mxu0 0.0
    %1696 = vmatpush1.xpose.msra.mxu0 0.0
    %1697 = vmatprep.subr.mxu0 0.0
    %1698 = vmatpush1.xpose.msra.mxu0 0.0
    %1699 = vmatprep.subr.mxu0 0.0
    %1700 = vmatpush1.xpose.msra.mxu0 0.0
    %1701 = vmatprep.subr.mxu0 0.0
    %1702 = vmatpush1.xpose.msra.mxu0 0.0
    %1703 = vmatprep.subr.mxu0 0.0
    %1704 = vmatpush1.xpose.msra.mxu0 0.0
    %1705 = vmatprep.subr.mxu0 0.0
    %1706 = vmatpush1.xpose.msra.mxu0 0.0
    %1707 = vmatprep.mubr.f32.mxu0 0.0
    %v1708 = vand.u32 %v968, 4294901760
    %v1709 = vsub.f32 %v968, %v1708
    %v1710 = vand.u32 %v1709, 4294901760
    %1711 = vmatmul.mubr.f32.gmra.mrb[0].mxu0 %v1710
    %v1712 = vpop.f32.mrb[0].mxu0
    %v1713 = vadd.f32 %v1639, %v1712
    %v1714 = vpop.f32.mrb[0].mxu0
    %1715 = vdwg.mxu0
    %1716 = vmatprep.subr.mxu0 0.0
    %v1717 = vand.u32 %v519, 4294901760
    %v1718 = vsub.f32 %v519, %v1717
    %v1719 = vand.u32 %v1718, 4294901760
    %1720 = vmatpush1.xpose.msra.mxu0 %v1719
    %1721 = vmatprep.subr.mxu0 0.0
    %1722 = vmatpush1.xpose.msra.mxu0 0.0
    %1723 = vmatprep.subr.mxu0 0.0
    %1724 = vmatpush1.xpose.msra.mxu0 0.0
    %1725 = vmatprep.subr.mxu0 0.0
    %1726 = vmatpush1.xpose.msra.mxu0 0.0
    %1727 = vmatprep.subr.mxu0 0.0
    %1728 = vmatpush1.xpose.msra.mxu0 0.0
    %1729 = vmatprep.subr.mxu0 0.0
    %1730 = vmatpush1.xpose.msra.mxu0 0.0
    %1731 = vmatprep.subr.mxu0 0.0
    %1732 = vmatpush1.xpose.msra.mxu0 0.0
    %1733 = vmatprep.subr.mxu0 0.0
    %1734 = vmatpush1.xpose.msra.mxu0 0.0
    %1735 = vmatprep.subr.mxu0 0.0
    %1736 = vmatpush1.xpose.msra.mxu0 0.0
    %1737 = vmatprep.subr.mxu0 0.0
    %1738 = vmatpush1.xpose.msra.mxu0 0.0
    %1739 = vmatprep.subr.mxu0 0.0
    %1740 = vmatpush1.xpose.msra.mxu0 0.0
    %1741 = vmatprep.subr.mxu0 0.0
    %1742 = vmatpush1.xpose.msra.mxu0 0.0
    %1743 = vmatprep.subr.mxu0 0.0
    %1744 = vmatpush1.xpose.msra.mxu0 0.0
    %1745 = vmatprep.subr.mxu0 0.0
    %1746 = vmatpush1.xpose.msra.mxu0 0.0
    %1747 = vmatprep.subr.mxu0 0.0
    %1748 = vmatpush1.xpose.msra.mxu0 0.0
    %1749 = vmatprep.subr.mxu0 0.0
    %1750 = vmatpush1.xpose.msra.mxu0 0.0
    %1751 = vmatprep.subr.mxu0 0.0
    %1752 = vmatpush1.xpose.msra.mxu0 0.0
    %1753 = vmatprep.subr.mxu0 0.0
    %1754 = vmatpush1.xpose.msra.mxu0 0.0
    %1755 = vmatprep.subr.mxu0 0.0
    %1756 = vmatpush1.xpose.msra.mxu0 0.0
    %1757 = vmatprep.subr.mxu0 0.0
    %1758 = vmatpush1.xpose.msra.mxu0 0.0
    %1759 = vmatprep.subr.mxu0 0.0
    %1760 = vmatpush1.xpose.msra.mxu0 0.0
    %1761 = vmatprep.subr.mxu0 0.0
    %1762 = vmatpush1.xpose.msra.mxu0 0.0
    %1763 = vmatprep.subr.mxu0 0.0
    %1764 = vmatpush1.xpose.msra.mxu0 0.0
    %1765 = vmatprep.subr.mxu0 0.0
    %1766 = vmatpush1.xpose.msra.mxu0 0.0
    %1767 = vmatprep.subr.mxu0 0.0
    %1768 = vmatpush1.xpose.msra.mxu0 0.0
    %1769 = vmatprep.subr.mxu0 0.0
    %1770 = vmatpush1.xpose.msra.mxu0 0.0
    %1771 = vmatprep.subr.mxu0 0.0
    %1772 = vmatpush1.xpose.msra.mxu0 0.0
    %1773 = vmatprep.subr.mxu0 0.0
    %1774 = vmatpush1.xpose.msra.mxu0 0.0
    %1775 = vmatprep.subr.mxu0 0.0
    %1776 = vmatpush1.xpose.msra.mxu0 0.0
    %1777 = vmatprep.subr.mxu0 0.0
    %1778 = vmatpush1.xpose.msra.mxu0 0.0
    %1779 = vmatprep.subr.mxu0 0.0
    %1780 = vmatpush1.xpose.msra.mxu0 0.0
    %1781 = vmatprep.subr.mxu0 0.0
    %1782 = vmatpush1.xpose.msra.mxu0 0.0
    %1783 = vmatprep.mubr.f32.mxu0 0.0
    %v1784 = vand.u32 %v968, 4294901760
    %1785 = vmatmul.mubr.f32.gmra.mrb[0].mxu0 %v1784
    %v1786 = vpop.f32.mrb[0].mxu0
    %v1787 = vadd.f32 %v1713, %v1786
    %v1788 = vpop.f32.mrb[0].mxu0
    %1789 = vdwg.mxu0
    %1790 = vmatprep.subr.mxu0 0.0
    %v1791 = vand.u32 %v519, 4294901760
    %1792 = vmatpush1.xpose.msra.mxu0 %v1791
    %1793 = vmatprep.subr.mxu0 0.0
    %1794 = vmatpush1.xpose.msra.mxu0 0.0
    %1795 = vmatprep.subr.mxu0 0.0
    %1796 = vmatpush1.xpose.msra.mxu0 0.0
    %1797 = vmatprep.subr.mxu0 0.0
    %1798 = vmatpush1.xpose.msra.mxu0 0.0
    %1799 = vmatprep.subr.mxu0 0.0
    %1800 = vmatpush1.xpose.msra.mxu0 0.0
    %1801 = vmatprep.subr.mxu0 0.0
    %1802 = vmatpush1.xpose.msra.mxu0 0.0
    %1803 = vmatprep.subr.mxu0 0.0
    %1804 = vmatpush1.xpose.msra.mxu0 0.0
    %1805 = vmatprep.subr.mxu0 0.0
    %1806 = vmatpush1.xpose.msra.mxu0 0.0
    %1807 = vmatprep.subr.mxu0 0.0
    %1808 = vmatpush1.xpose.msra.mxu0 0.0
    %1809 = vmatprep.subr.mxu0 0.0
    %1810 = vmatpush1.xpose.msra.mxu0 0.0
    %1811 = vmatprep.subr.mxu0 0.0
    %1812 = vmatpush1.xpose.msra.mxu0 0.0
    %1813 = vmatprep.subr.mxu0 0.0
    %1814 = vmatpush1.xpose.msra.mxu0 0.0
    %1815 = vmatprep.subr.mxu0 0.0
    %1816 = vmatpush1.xpose.msra.mxu0 0.0
    %1817 = vmatprep.subr.mxu0 0.0
    %1818 = vmatpush1.xpose.msra.mxu0 0.0
    %1819 = vmatprep.subr.mxu0 0.0
    %1820 = vmatpush1.xpose.msra.mxu0 0.0
    %1821 = vmatprep.subr.mxu0 0.0
    %1822 = vmatpush1.xpose.msra.mxu0 0.0
    %1823 = vmatprep.subr.mxu0 0.0
    %1824 = vmatpush1.xpose.msra.mxu0 0.0
    %1825 = vmatprep.subr.mxu0 0.0
    %1826 = vmatpush1.xpose.msra.mxu0 0.0
    %1827 = vmatprep.subr.mxu0 0.0
    %1828 = vmatpush1.xpose.msra.mxu0 0.0
    %1829 = vmatprep.subr.mxu0 0.0
    %1830 = vmatpush1.xpose.msra.mxu0 0.0
    %1831 = vmatprep.subr.mxu0 0.0
    %1832 = vmatpush1.xpose.msra.mxu0 0.0
    %1833 = vmatprep.subr.mxu0 0.0
    %1834 = vmatpush1.xpose.msra.mxu0 0.0
    %1835 = vmatprep.subr.mxu0 0.0
    %1836 = vmatpush1.xpose.msra.mxu0 0.0
    %1837 = vmatprep.subr.mxu0 0.0
    %1838 = vmatpush1.xpose.msra.mxu0 0.0
    %1839 = vmatprep.subr.mxu0 0.0
    %1840 = vmatpush1.xpose.msra.mxu0 0.0
    %1841 = vmatprep.subr.mxu0 0.0
    %1842 = vmatpush1.xpose.msra.mxu0 0.0
    %1843 = vmatprep.subr.mxu0 0.0
    %1844 = vmatpush1.xpose.msra.mxu0 0.0
    %1845 = vmatprep.subr.mxu0 0.0
    %1846 = vmatpush1.xpose.msra.mxu0 0.0
    %1847 = vmatprep.subr.mxu0 0.0
    %1848 = vmatpush1.xpose.msra.mxu0 0.0
    %1849 = vmatprep.subr.mxu0 0.0
    %1850 = vmatpush1.xpose.msra.mxu0 0.0
    %1851 = vmatprep.subr.mxu0 0.0
    %1852 = vmatpush1.xpose.msra.mxu0 0.0
    %1853 = vmatprep.subr.mxu0 0.0
    %1854 = vmatpush1.xpose.msra.mxu0 0.0
    %1855 = vmatprep.mubr.f32.mxu0 0.0
    %v1856 = vand.u32 %v968, 4294901760
    %1857 = vmatmul.mubr.f32.gmra.mrb[0].mxu0 %v1856
    %v1858 = vpop.f32.mrb[0].mxu0
    %v1859 = vadd.f32 %v1787, %v1858
    %v1860 = vpop.f32.mrb[0].mxu0
    %1861 = vdwg.mxu0
    %s1862 = smul.u32 0, 8
    %v1863 = vlaneseq
    %v1864 = vshrl.u32 %v1863, 7
    %v1865 = vlaneseq
    %v1866 = vand.u32 %v1865, 127
    %v1867 = vstv %s1862
    %v1868 = vadd.s32 %v1864, %v1867
    %vm1869 = vcmp.eq.s32.totalorder %v1866, %v1868
    %v1870 = vsel %vm1869, -1e+30, %v515
    %v1871 = vsel %vm1869, -1e+30, %v1859
    %v1872 = vmul.f32 %v59, %v60
    %v1873 = vsel %vm65, %v1872, 0.0
    %1874 = vadd.xlane.f32.xlu0 %v1873
    %v1875 = vpop.xlane.xlu0 %1874
    %v1876 = vmul.f32 %v1875, 14.285714
    %vm1877 = vcmask 64512
    %v1878 = vsel %vm1877, %v1870, -inf
    %1879 = vmax.xlane.f32.xlu0 %v1878
    %v1880 = vpop.xlane.xlu0 %1879
    %v1881 = vsel %vm1877, %v964, -inf
    %1882 = vmax.xlane.f32.xlu0 %v1881
    %v1883 = vpop.xlane.xlu0 %1882
    %v1884 = vmax.f32 %v1880, %v1883
    %v1885 = vsel %vm1877, %v1413, -inf
    %1886 = vmax.xlane.f32.xlu0 %v1885
    %v1887 = vpop.xlane.xlu0 %1886
    %v1888 = vsel %vm1877, %v1871, -inf
    %1889 = vmax.xlane.f32.xlu0 %v1888
    %v1890 = vpop.xlane.xlu0 %1889
    %v1891 = vmax.f32 %v1887, %v1890
    %v1892 = vsub.f32 %v1870, %v1884
    %v1893 = vmul.f32 %v1892, 1.442695
    %v1894 = vpow.pop %v1893
    %v1895 = vsel %vm1877, %v1894, 0.0
    %1896 = vadd.xlane.f32.xlu0 %v1895
    %v1897 = vpop.xlane.xlu0 %1896
    %v1898 = vsub.f32 %v964, %v1884
    %v1899 = vmul.f32 %v1898, 1.442695
    %v1900 = vpow.pop %v1899
    %v1901 = vsel %vm1877, %v1900, 0.0
    %1902 = vadd.xlane.f32.xlu0 %v1901
    %v1903 = vpop.xlane.xlu0 %1902
    %v1904 = vadd.f32 %v1897, %v1903
    %v1905 = vsub.f32 %v1413, %v1891
    %v1906 = vmul.f32 %v1905, 1.442695
    %v1907 = vpow.pop %v1906
    %v1908 = vsel %vm1877, %v1907, 0.0
    %1909 = vadd.xlane.f32.xlu0 %v1908
    %v1910 = vpop.xlane.xlu0 %1909
    %v1911 = vsub.f32 %v1871, %v1891
    %v1912 = vmul.f32 %v1911, 1.442695
    %v1913 = vpow.pop %v1912
    %v1914 = vsel %vm1877, %v1913, 0.0
    %1915 = vadd.xlane.f32.xlu0 %v1914
    %v1916 = vpop.xlane.xlu0 %1915
    %v1917 = vadd.f32 %v1910, %v1916
    %v1918 = vsub.f32 %v1876, %v1884
    %v1919 = vlog2.pop %v1904
    %v1920 = vmul.f32 %v1919, 0.6931472
    %v1921 = vsub.f32 %v1918, %v1920
    %v1922 = vmul.f32 %v1921, -1.0
    %v1923 = vsub.f32 %v1876, %v1891
    %v1924 = vlog2.pop %v1917
    %v1925 = vmul.f32 %v1924, 0.6931472
    %v1926 = vsub.f32 %v1923, %v1925
    %v1927 = vmul.f32 %v1926, -1.0
    %v1928 = vld [vmem:[#allocation2] sm:$0x1]
    %v1929 = vadd.f32 %v1922, %v1927
    %vm1930 = vcmask 7168
    %v1931 = vsel %vm1930, %v1929, 0.0
    %1932 = vadd.xlane.f32.xlu0 %v1931
    %v1933 = vpop.xlane.xlu0 %1932
    %v1934 = vrot.slane %v1933, 4
    %v1935 = vadd.f32 %v1933, %v1934
    %v1936 = vrot.slane %v1935, 2
    %v1937 = vadd.f32 %v1935, %v1936
    %v1938 = vrot.slane %v1937, 1
    %v1939 = vadd.f32 %v1937, %v1938
    %s1940 = vtos %v1939
    %v1941 = vstv %s1940
    %v1942 = vadd.f32 %v1928, %v1941
    %vm1943 = vcmask 0
    %1944 = vst.msk [vmem:[#allocation2] sm:$0x1] %vm1943, %v1942
    // Predicated region
    $region34: #{tpu_custom_call.1} parent=1 // pred_check
      %p1945 = pneg %p53
    $region35: #{tpu_custom_call.1} parent=1 // pred_check_branch
      %1947 = sbr.rel (%p1945) target = $region37
    $region36: #{tpu_custom_call.1} parent=1 // pred_region
      %v1948 = vld [vmem:[#allocation2] sm:$0x1]
      %v1949 = vmul.f32 %v1948, 0.0625
      %1950 = vst.msk [vmem:[#allocation9] sm:$0x1] %vm1943, %v1949
    $region37: #{tpu_custom_call.1} parent=1 // pred_fallthru
      _
    // Predicated region
    $region38: #{tpu_custom_call.1} parent=1 // pred_check
      _
    $region39: #{tpu_custom_call.1} parent=1 // pred_check_branch
      %1952 = sbr.rel (0) target = $region41
    $region40: #{tpu_custom_call.1} parent=1 // pred_region
      %s1954 = ssub.s32 16, 16
      %1955 = vsyncadd [#allocation5], %s1954
      %s1957 = sshll.u32 [#allocation9], 4
      %s1958 = int_to_ptr.vmem [resolvable:$true] %s1957
      %1960 = dma.vmem_to_hbm [thread:$0]  %s1958, 16, %s4, [#allocation5]
    $region41: #{tpu_custom_call.1} parent=1 // pred_fallthru
      _
    // Predicated region
    $region42: #{tpu_custom_call.1} parent=1 // pred_check
      _
    $region43: #{tpu_custom_call.1} parent=1 // pred_check_branch
      %1962 = sbr.rel (0) target = $region45
    $region44: #{tpu_custom_call.1} parent=1 // pred_region
      %1963 = dma.done [#allocation5], 16
    $region45: #{tpu_custom_call.1} parent=1 // pred_fallthru
      _
    %1964 = vsyncpa [#allocation4], 1
    %1965 = vsyncpa [#allocation7], 1
    %1966 = vsyncpa [#allocation5], 1

</llo_original>
